<compile_context>
chip_gen: v7x
topology: tpu7x:2x2x1
jax: 0.10.0
libtpu: 0.0.40
codegen_flags: <defaults>
</compile_context>

<pallas_src>
import jax
import jax.numpy as jnp
from jax import lax
from jax.experimental import pallas as pl
from jax.experimental.pallas import tpu as pltpu


# ----------------------------------------------------------------------------
# Kernel 1: EnhancedAttnPool, B chunks per grid step (folded Q/K projections)
# ----------------------------------------------------------------------------
def attn_pool_kernel(hs_ref, mask_ref, a_ref, u_ref, w_ref, c0_ref, out_ref):
    """
    hs_ref:   (B, S, H) hidden states (native dtype: f32 or bf16)
    mask_ref: (B, S) i32 attention mask
    a_ref:    (H, H)      folded  A  = Wq^T Wk / (sqrt(H) * S)   (hs dtype if bf16)
    u_ref:    (1, H) f32  folded  u  = bq Wk   / sqrt(H)
    w_ref:    (1, H) f32  folded  w  = Wq^T bk / (sqrt(H) * S)
    c0_ref:   (1, 1) f32  folded  c0 = bq.bk   / sqrt(H)
    out_ref:  (B, H) f32  pooled chunk embeddings
    """
    b, s, h = hs_ref.shape
    hs = hs_ref[...]                          # (B,S,H) native dtype
    mask = mask_ref[...]                      # (B,S) i32

    # Per-chunk sums over the sequence via a batched ones-matmul on the MXU
    # (f32 accumulation, no f32 temp of the hs tile; 1/S is folded into A and w).
    ones = jnp.ones((b, 1, s), hs_ref.dtype)
    sums = jnp.einsum('bqs,bsh->bqh', ones, hs,
                      preferred_element_type=jnp.float32).reshape(b, h)     # (B,H) f32

    # Folded Q/K projections: one dense (B,H)@(H,H) MXU matmul + a small VPU row-dot.
    qa = jnp.dot(sums.astype(a_ref.dtype), a_ref[...],
                 preferred_element_type=jnp.float32) + u_ref[...]           # (B,H) f32
    bias = jnp.sum(sums * w_ref[...], axis=1, keepdims=True) + c0_ref[...]  # (B,1) f32

    # scores[b,s] = qa[b]·hs[b,s] + bias[b]   (canonical flash 'bqd,bkd->bqk'
    # orientation: hs is never explicitly transposed; the pooled matmul below
    # contracts hs on its natural sublane (S) axis.)
    scores = jnp.einsum('bqh,bsh->bqs',
                        qa.reshape(b, 1, h).astype(hs_ref.dtype), hs,
                        preferred_element_type=jnp.float32).reshape(b, s)   # (B,S)
    scores = scores + bias
    scores = jnp.where(mask == 0, jnp.float32(-1e9), scores)

    # Batched softmax over seq in a dense (B,S) layout (all 8 sublanes busy);
    # the divide goes to the EUP via reciprocal on the tiny (B,1) denominator.
    m = jnp.max(scores, axis=1, keepdims=True)
    p = jnp.exp(scores - m)
    inv = pl.reciprocal(jnp.sum(p, axis=1, keepdims=True), approx=True)     # (B,1)

    pooled = jnp.einsum('bqs,bsh->bqh',
                        p.reshape(b, 1, s).astype(hs_ref.dtype), hs,
                        preferred_element_type=jnp.float32).reshape(b, h)   # (B,H)
    out_ref[...] = (pooled * inv).astype(out_ref.dtype)                     # dense store


def attn_pool(hidden_states, attention_mask, wq, bq, wk, bk, *,
              block_chunks=8, vmem_limit_bytes=None):
    """hidden_states: [N, S, H]; attention_mask: [N, S]; returns pooled [N, H] f32."""
    n, s, h = hidden_states.shape
    bsz = block_chunks                       # multiple of 8 (dense sublane stores)
    num_blocks = pl.cdiv(n, bsz)
    n_pad = num_blocks * bsz

    # Consume hs at its native dtype (bf16 encoders halve the HBM-bound stream).
    hs = hidden_states
    mask = attention_mask.astype(jnp.int32)
    if n_pad != n:
        # Pad ONLY the tiny mask with zeros (tail rows fully masked).  hidden_states
        # is never copied: its last grid block is a partial block, Pallas clamps the
        # DMA, the stale tail rows are masked out and sliced off below.
        mask = jnp.concatenate([mask, jnp.zeros((n_pad - n, s), jnp.int32)], axis=0)

    # Fold Q/K Linear layers (y = x @ W^T + b), the 1/sqrt(H) score scale and the 1/S
    # of the mean into four small constants:
    #   scores = sum_s(hs) @ A @ hs^T + u @ hs^T + sum_s(hs)·w + c0
    scale = 1.0 / (h ** 0.5)
    wq32 = wq.astype(jnp.float32)
    wk32 = wk.astype(jnp.float32)
    bq32 = bq.astype(jnp.float32)
    bk32 = bk.astype(jnp.float32)
    a_mat = (wq32.T @ wk32) * (scale / s)                    # (H,H)  absorbs 1/S
    u_vec = ((bq32 @ wk32) * scale).reshape(1, h)            # (1,H)
    w_vec = ((wq32.T @ bk32) * (scale / s)).reshape(1, h)    # (1,H)  absorbs 1/S
    c0 = (jnp.dot(bq32, bk32) * scale).reshape(1, 1)         # (1,1)
    # bf16 hs -> keep the resident (H,H) matrix in bf16 too (halves its VMEM and
    # matches the MXU input dtype of the qa matmul); u/w/c0 stay f32 (tiny adds).
    a_mat = a_mat.astype(hs.dtype if hs.dtype == jnp.bfloat16 else jnp.float32)

    if vmem_limit_bytes is None:
        # Double-buffered hs/mask/out blocks + the (constant but double-buffered)
        # folded params.  block_chunks is the per-generation lever:
        #   v5e ~4-8 (16 MiB default scoped VMEM), v6e 16-32 (128 MiB), v7x 8-16
        #   (64 MiB per TC -- do NOT copy the v6e value).
        est = 2 * (bsz * s * h * hs.dtype.itemsize
                   + bsz * s * 4
                   + bsz * h * 4
                   + h * h * a_mat.dtype.itemsize
                   + 2 * h * 4 + 4)
        vmem_limit_bytes = min(max(int(est * 1.5) + (4 << 20), 32 << 20), 96 << 20)

    out = pl.pallas_call(
        attn_pool_kernel,
        out_shape=jax.ShapeDtypeStruct((n_pad, h), jnp.float32),
        grid_spec=pltpu.PrefetchScalarGridSpec(
            num_scalar_prefetch=0,
            grid=(num_blocks,),
            in_specs=[
                pl.BlockSpec((bsz, s, h), lambda i: (i, 0, 0)),
                pl.BlockSpec((bsz, s), lambda i: (i, 0)),
                pl.BlockSpec((h, h), lambda i: (0, 0)),
                pl.BlockSpec((1, h), lambda i: (0, 0)),
                pl.BlockSpec((1, h), lambda i: (0, 0)),
                pl.BlockSpec((1, 1), lambda i: (0, 0)),
            ],
            out_specs=pl.BlockSpec((bsz, h), lambda i: (i, 0)),
        ),
        # Chunk axis is embarrassingly parallel -> shards across both TCs on v7x.
        compiler_params=pltpu.CompilerParams(
            dimension_semantics=("parallel",),
            vmem_limit_bytes=vmem_limit_bytes),
    )(hs, mask, a_mat, u_vec, w_vec, c0)
    return out[:n]


# ----------------------------------------------------------------------------
# Kernel 2: scatter-mean of chunk embeddings into per-document embeddings,
#           tiled over the chunk axis with a resident (T, H) accumulator
# ----------------------------------------------------------------------------
def doc_mean_kernel(sm_ref, pooled_ref, out_ref, counts_ref):
    """
    sm_ref:     (1, TN) i32  chunk -> document index (-1 for padded chunks)
    pooled_ref: (TN, H) f32  pooled chunk embeddings (tile of the chunk axis)
    out_ref:    (T, H)  f32  per-document sums -> means (resident accumulator)
    counts_ref: (T, 1)  f32  VMEM scratch: per-document chunk counts
    """
    i = pl.program_id(0)

    @pl.when(i == 0)
    def _():
        out_ref[...] = jnp.zeros_like(out_ref)
        counts_ref[...] = jnp.zeros_like(counts_ref)

    t = out_ref.shape[0]
    tn = pooled_ref.shape[0]
    sm = sm_ref[...]                                          # (1, TN)
    doc_ids = lax.broadcasted_iota(jnp.int32, (t, tn), 0)     # (T, TN)
    one_hot = (doc_ids == sm).astype(jnp.float32)             # -1 never matches
    out_ref[...] += jnp.dot(one_hot, pooled_ref[...],
                            preferred_element_type=jnp.float32)
    counts_ref[...] += jnp.sum(one_hot, axis=1, keepdims=True)

    @pl.when(i == pl.num_programs(0) - 1)
    def _():
        out_ref[...] = out_ref[...] / jnp.maximum(counts_ref[...], 1.0)  # clamp(min=1)


def doc_mean(pooled, sample_map, num_texts, *, tile_chunks=512):
    n, h = pooled.shape
    tn = min(tile_chunks, ((n + 7) // 8) * 8)     # large tiles amortize per-step overhead
    n_pad = ((n + tn - 1) // tn) * tn
    pad = n_pad - n

    pooled_p = pooled.astype(jnp.float32)
    sm = sample_map.astype(jnp.int32)
    if pad:
        # pooled is only (N,H) f32 (~1-2% of the hs traffic) -> zero-padding it is
        # cheap and keeps stale VMEM out of the accumulating matmul.
        pooled_p = jnp.concatenate([pooled_p, jnp.zeros((pad, h), jnp.float32)], axis=0)
        sm = jnp.concatenate([sm, jnp.full((pad,), -1, jnp.int32)], axis=0)
    sm2 = sm.reshape(1, n_pad)

    # TODO(synk): for very large num_texts the resident (num_texts, H) f32 accumulator
    # approaches v7x's 64 MiB VMEM; add a second grid axis tiling num_texts there.
    return pl.pallas_call(
        doc_mean_kernel,
        out_shape=jax.ShapeDtypeStruct((num_texts, h), jnp.float32),
        grid_spec=pltpu.PrefetchScalarGridSpec(
            num_scalar_prefetch=0,
            grid=(n_pad // tn,),
            in_specs=[
                pl.BlockSpec((1, tn), lambda i: (0, i)),
                pl.BlockSpec((tn, h), lambda i: (i, 0)),
            ],
            out_specs=pl.BlockSpec((num_texts, h), lambda i: (0, 0)),
            scratch_shapes=[pltpu.VMEM((num_texts, 1), jnp.float32)],
        ),
        compiler_params=pltpu.CompilerParams(dimension_semantics=("arbitrary",)),
    )(sm2, pooled_p)


# ----------------------------------------------------------------------------
# LongTextEncoder.forward equivalent (post-encoder part)
# ----------------------------------------------------------------------------
def long_text_encoder_forward(hidden_states, attention_mask, sample_map,
                              num_texts, params):
    # TODO(synk): tokenizer + pretrained transformer encoder (self.model.encoder)
    # have no Pallas equivalent; `hidden_states` stands in for last_hidden_state.
    # TODO(synk): nn.Dropout(0.2) treated as identity (inference mode); train-mode
    # dropout would need pltpu.prng_seed / pltpu.prng_random_bits.
    pooled = attn_pool(hidden_states, attention_mask,
                       params["wq"], params["bq"], params["wk"], params["bk"])
    return doc_mean(pooled, sample_map, num_texts)


# Pure-JAX reference for verification.
def reference(hidden_states, attention_mask, sample_map, num_texts, params):
    hs = hidden_states.astype(jnp.float32)
    h = hs.shape[-1]
    q = hs.mean(axis=1, keepdims=True) @ params["wq"].T + params["bq"]   # [N,1,H]
    k = hs @ params["wk"].T + params["bk"]                               # [N,S,H]
    scores = jnp.einsum('nqh,nsh->nqs', q, k)[:, 0, :] / (h ** 0.5)      # [N,S]
    scores = jnp.where(attention_mask == 0, -1e9, scores)
    alphas = jax.nn.softmax(scores, axis=1)[..., None]                   # [N,S,1]
    pooled = (alphas * hs).sum(axis=1)                                   # [N,H]
    one_hot = (sample_map[None, :] == jnp.arange(num_texts)[:, None]).astype(jnp.float32)
    sums = one_hot @ pooled
    counts = jnp.clip(one_hot.sum(axis=1, keepdims=True), 1.0, None)
    return sums / counts


if __name__ == "__main__":
    # Small, deterministic example shapes.
    num_texts = 2        # len(texts)
    total_chunks = 5     # chunks after overflow splitting
    seq = 16             # chunk_size (small stand-in for 512)
    hidden = 32          # model.config.hidden_size

    key = jax.random.PRNGKey(0)
    k_hs, k_wq, k_bq, k_wk, k_bk = jax.random.split(key, 5)

    hidden_states = jax.random.normal(k_hs, (total_chunks, seq, hidden), jnp.float32)

    # attention mask: chunks have different valid lengths (trailing padding zeros)
    lengths = jnp.array([16, 12, 8, 16, 10], dtype=jnp.int32)
    attention_mask = (jnp.arange(seq)[None, :] < lengths[:, None]).astype(jnp.int32)

    # overflow_to_sample_mapping: chunks 0..2 -> text 0, chunks 3..4 -> text 1
    sample_map = jnp.array([0, 0, 0, 1, 1], dtype=jnp.int32)

    params = {
        "wq": 0.1 * jax.random.normal(k_wq, (hidden, hidden), jnp.float32),
        "bq": 0.1 * jax.random.normal(k_bq, (hidden,), jnp.float32),
        "wk": 0.1 * jax.random.normal(k_wk, (hidden, hidden), jnp.float32),
        "bk": 0.1 * jax.random.normal(k_bk, (hidden,), jnp.float32),
    }

    out = long_text_encoder_forward(hidden_states, attention_mask, sample_map,
                                    num_texts, params)
    out = jax.block_until_ready(out)

    ref = reference(hidden_states, attention_mask, sample_map, num_texts, params)
    assert out.shape == (num_texts, hidden)
    # Tolerance slightly loosened vs 1e-4: the softmax denominator uses
    # pl.reciprocal(approx=True) and the 1/sqrt(H), 1/S scales are folded into the
    # pre-computed A/u/w/c0 constants.
    assert jnp.allclose(out, ref, rtol=5e-3, atol=2e-3), "mismatch vs pure-JAX reference"

    print("KERNEL_OK")
</pallas_src>

<mosaic_0001>
module attributes {stable_mosaic.version = 11 : i64} {
  func.func @attn_pool_kernel(%arg0: i32, %arg1: memref<8x16x32xf32, #tpu.memory_space<vmem>>, %arg2: memref<8x16xi32, #tpu.memory_space<vmem>>, %arg3: memref<32x32xf32, #tpu.memory_space<vmem>>, %arg4: memref<1x32xf32, #tpu.memory_space<vmem>>, %arg5: memref<1x32xf32, #tpu.memory_space<vmem>>, %arg6: memref<1x1xf32, #tpu.memory_space<vmem>>, %arg7: memref<8x32xf32, #tpu.memory_space<vmem>>) attributes {dimension_semantics = [#tpu.dimension_semantics<parallel>], iteration_bounds = array<i64: 1>, scalar_prefetch = 0 : i64, scratch_operands = 0 : i64, tpu.core_type = #tpu.core_type<tc>, window_params = [{transform_indices = @transform_0, window_bounds = array<i64: 8, 16, 32>}, {transform_indices = @transform_1, window_bounds = array<i64: 8, 16>}, {pipeline_mode = #tpu.pipeline_mode<synchronous>, transform_indices = @transform_2, window_bounds = array<i64: 32, 32>}, {pipeline_mode = #tpu.pipeline_mode<synchronous>, transform_indices = @transform_3, window_bounds = array<i64: 1, 32>}, {pipeline_mode = #tpu.pipeline_mode<synchronous>, transform_indices = @transform_4, window_bounds = array<i64: 1, 32>}, {pipeline_mode = #tpu.pipeline_mode<synchronous>, transform_indices = @transform_5, window_bounds = array<i64: 1, 1>}, {transform_indices = @transform_6, window_bounds = array<i64: 8, 32>}]} {
    %c0 = arith.constant 0 : index
    %c0_0 = arith.constant 0 : index
    %c0_1 = arith.constant 0 : index
    %0 = vector.load %arg1[%c0, %c0_0, %c0_1] : memref<8x16x32xf32, #tpu.memory_space<vmem>>, vector<8x16x32xf32>
    %c0_2 = arith.constant 0 : index
    %c0_3 = arith.constant 0 : index
    %1 = vector.load %arg2[%c0_2, %c0_3] : memref<8x16xi32, #tpu.memory_space<vmem>>, vector<8x16xi32>
    %cst = arith.constant 1.000000e+00 : f32
    %2 = vector.broadcast %cst : f32 to vector<8x1x16xf32>
    "tpu.trace_start"() <{level = 10 : i32, message = "bqs,bsh->bqh"}> : () -> ()
    %cst_4 = arith.constant dense<0.000000e+00> : vector<8x1x32xf32>
    %3 = tpu.matmul %2, %0, %cst_4 {dimension_numbers = #tpu.dot_dimension_numbers<[2], [1], [1], [2], [0, 0, 0, 1, 1, 2], [0], [0]>} : vector<8x1x16xf32>, vector<8x16x32xf32>, vector<8x1x32xf32> -> vector<8x1x32xf32>
    "tpu.trace_stop"() : () -> ()
    %4 = vector.shape_cast %3 : vector<8x1x32xf32> to vector<8x32xf32>
    %c0_5 = arith.constant 0 : index
    %c0_6 = arith.constant 0 : index
    %5 = vector.load %arg3[%c0_5, %c0_6] : memref<32x32xf32, #tpu.memory_space<vmem>>, vector<32x32xf32>
    %cst_7 = arith.constant dense<0.000000e+00> : vector<8x32xf32>
    %6 = tpu.matmul %4, %5, %cst_7 {dimension_numbers = #tpu.dot_dimension_numbers<[1], [0], [0], [1], [0, 0, 1, 1], [], []>} : vector<8x32xf32>, vector<32x32xf32>, vector<8x32xf32> -> vector<8x32xf32>
    %c0_8 = arith.constant 0 : index
    %c0_9 = arith.constant 0 : index
    %7 = vector.load %arg4[%c0_8, %c0_9] : memref<1x32xf32, #tpu.memory_space<vmem>>, vector<1x32xf32>
    %8 = vector.broadcast %7 : vector<1x32xf32> to vector<8x32xf32>
    %9 = arith.addf %6, %8 : vector<8x32xf32>
    %c0_10 = arith.constant 0 : index
    %c0_11 = arith.constant 0 : index
    %10 = vector.load %arg5[%c0_10, %c0_11] : memref<1x32xf32, #tpu.memory_space<vmem>>, vector<1x32xf32>
    %11 = vector.broadcast %10 : vector<1x32xf32> to vector<8x32xf32>
    %12 = arith.mulf %4, %11 : vector<8x32xf32>
    %cst_12 = arith.constant dense<0.000000e+00> : vector<8xf32>
    %13 = vector.multi_reduction <add>, %12, %cst_12 [1] : vector<8x32xf32> to vector<8xf32>
    %14 = vector.shape_cast %13 : vector<8xf32> to vector<8x1xf32>
    %c0_13 = arith.constant 0 : index
    %c0_14 = arith.constant 0 : index
    %15 = vector.load %arg6[%c0_13, %c0_14] : memref<1x1xf32, #tpu.memory_space<vmem>>, vector<1x1xf32>
    %16 = vector.broadcast %15 : vector<1x1xf32> to vector<8x1xf32>
    %17 = arith.addf %14, %16 : vector<8x1xf32>
    %18 = vector.shape_cast %9 : vector<8x32xf32> to vector<8x1x32xf32>
    "tpu.trace_start"() <{level = 10 : i32, message = "bqh,bsh->bqs"}> : () -> ()
    %cst_15 = arith.constant dense<0.000000e+00> : vector<8x1x16xf32>
    %19 = tpu.matmul %18, %0, %cst_15 {dimension_numbers = #tpu.dot_dimension_numbers<[2], [2], [1], [1], [0, 0, 0, 1, 1, 1], [0], [0]>} : vector<8x1x32xf32>, vector<8x16x32xf32>, vector<8x1x16xf32> -> vector<8x1x16xf32>
    "tpu.trace_stop"() : () -> ()
    %20 = vector.shape_cast %19 : vector<8x1x16xf32> to vector<8x16xf32>
    %21 = vector.broadcast %17 : vector<8x1xf32> to vector<8x16xf32>
    %22 = arith.addf %20, %21 : vector<8x16xf32>
    %c0_i32 = arith.constant 0 : i32
    %23 = vector.broadcast %c0_i32 : i32 to vector<8x16xi32>
    %24 = arith.cmpi eq, %1, %23 : vector<8x16xi32>
    %cst_16 = arith.constant -1.000000e+09 : f32
    %25 = vector.broadcast %cst_16 : f32 to vector<8x16xf32>
    %26 = arith.select %24, %25, %22 : vector<8x16xi1>, vector<8x16xf32>
    %cst_17 = arith.constant dense<0xFF800000> : vector<8xf32>
    %27 = vector.multi_reduction <maximumf>, %26, %cst_17 [1] : vector<8x16xf32> to vector<8xf32>
    %28 = vector.shape_cast %27 : vector<8xf32> to vector<8x1xf32>
    %29 = vector.broadcast %28 : vector<8x1xf32> to vector<8x16xf32>
    %30 = arith.subf %26, %29 : vector<8x16xf32>
    %31 = math.exp %30 : vector<8x16xf32>
    %cst_18 = arith.constant dense<0.000000e+00> : vector<8xf32>
    %32 = vector.multi_reduction <add>, %31, %cst_18 [1] : vector<8x16xf32> to vector<8xf32>
    %33 = vector.shape_cast %32 : vector<8xf32> to vector<8x1xf32>
    %34 = tpu.reciprocal %33 {approx = true} : vector<8x1xf32> -> vector<8x1xf32>
    %35 = vector.shape_cast %31 : vector<8x16xf32> to vector<8x1x16xf32>
    "tpu.trace_start"() <{level = 10 : i32, message = "bqs,bsh->bqh"}> : () -> ()
    %cst_19 = arith.constant dense<0.000000e+00> : vector<8x1x32xf32>
    %36 = tpu.matmul %35, %0, %cst_19 {dimension_numbers = #tpu.dot_dimension_numbers<[2], [1], [1], [2], [0, 0, 0, 1, 1, 2], [0], [0]>} : vector<8x1x16xf32>, vector<8x16x32xf32>, vector<8x1x32xf32> -> vector<8x1x32xf32>
    "tpu.trace_stop"() : () -> ()
    %37 = vector.shape_cast %36 : vector<8x1x32xf32> to vector<8x32xf32>
    %38 = vector.broadcast %34 : vector<8x1xf32> to vector<8x32xf32>
    %39 = arith.mulf %37, %38 : vector<8x32xf32>
    %c0_20 = arith.constant 0 : index
    %c0_21 = arith.constant 0 : index
    %40 = vector.load %arg7[%c0_20, %c0_21] : memref<8x32xf32, #tpu.memory_space<vmem>>, vector<8x32xf32>
    tpu.vector_store %arg7[%c0_20, %c0_21], %39 {strides = array<i32>} : memref<8x32xf32, #tpu.memory_space<vmem>>, vector<8x32xf32>,
    return
  }
  func.func @transform_0(%arg0: i32) -> (i32, i32, i32) {
    %c0_i32 = arith.constant 0 : i32
    %c0_i32_0 = arith.constant 0 : i32
    %c0_i32_1 = arith.constant 0 : i32
    return %arg0, %c0_i32, %c0_i32_0 : i32, i32, i32
  }
  func.func @transform_1(%arg0: i32) -> (i32, i32) {
    %c0_i32 = arith.constant 0 : i32
    %c0_i32_0 = arith.constant 0 : i32
    return %arg0, %c0_i32 : i32, i32
  }
  func.func @transform_2(%arg0: i32) -> (i32, i32) {
    %c0_i32 = arith.constant 0 : i32
    %c0_i32_0 = arith.constant 0 : i32
    %c0_i32_1 = arith.constant 0 : i32
    return %c0_i32, %c0_i32_0 : i32, i32
  }
  func.func @transform_3(%arg0: i32) -> (i32, i32) {
    %c0_i32 = arith.constant 0 : i32
    %c0_i32_0 = arith.constant 0 : i32
    %c0_i32_1 = arith.constant 0 : i32
    return %c0_i32, %c0_i32_0 : i32, i32
  }
  func.func @transform_4(%arg0: i32) -> (i32, i32) {
    %c0_i32 = arith.constant 0 : i32
    %c0_i32_0 = arith.constant 0 : i32
    %c0_i32_1 = arith.constant 0 : i32
    return %c0_i32, %c0_i32_0 : i32, i32
  }
  func.func @transform_5(%arg0: i32) -> (i32, i32) {
    %c0_i32 = arith.constant 0 : i32
    %c0_i32_0 = arith.constant 0 : i32
    %c0_i32_1 = arith.constant 0 : i32
    return %c0_i32, %c0_i32_0 : i32, i32
  }
  func.func @transform_6(%arg0: i32) -> (i32, i32) {
    %c0_i32 = arith.constant 0 : i32
    %c0_i32_0 = arith.constant 0 : i32
    return %arg0, %c0_i32 : i32, i32
  }
}

</mosaic_0001>

<llo_original>
// kernel: tpu_custom_call.1
$region0: #{tpu_custom_call.1}
  #allocation0 [shape = 'u32[]', space=smem, size = 0x4, offset = 0x4, fixed_abs, tag = 'smem constant byte address 0x4 - core index']
  #allocation1 [shape = 'u32[144,128]{1,0:T(1,128)}', space=vmem, size = 0x12000, scoped, tag = 'internal scratch']
  #allocation2 [shape = 'f32[1,1]{1,0:T(1,128)S(1)}', space=vmem, size = 0x200, scoped, tag = 'scoped memory for tpu_custom_call.1']
  %s0 = inlined_call_operand.hbm [shape: f32[5,16,32], index: 0, kind: input, shape index: {}]
  %s1 = inlined_call_operand.hbm [shape: s32[8,16], index: 1, kind: input, shape index: {}]
  %s2 = inlined_call_operand.hbm [shape: f32[32,32], index: 2, kind: input, shape index: {}]
  %s3 = inlined_call_operand.vmem [shape: f32[1,32], index: 3, kind: input, shape index: {}]
  %s4 = inlined_call_operand.vmem [shape: f32[1,32], index: 4, kind: input, shape index: {}]
  %s5 = inlined_call_operand.<no memory space> [shape: f32[1,1], index: 5, kind: input, shape index: {}]
  %s6 = inlined_call_operand.hbm [shape: f32[8,32], index: 6, kind: output, shape index: {}]
  %s7 = sld [smem:[#allocation0]]
  $region46: #{tpu_custom_call.1} parent=0
    _
  %s9 = ssub.s32 1, %s7
  %s10 = scalar_select 0, %s9, %s7
  %v11 = vstv %s5
  %12 = vst [vmem:[#allocation2] sm:$0x1] %v11
  $region1: #{tpu_custom_call.1} parent=0
    #allocation3 [shape = 'u8[65536]{0}', space=vmem, size = 0x10000, scoped, tag = 'input window, operand 0, single buffered']
    #allocation4 [shape = 's32[1]{0}', space=sflag, size = 0x4, scoped, tag = 'scoped memory for tpu_custom_call.1']
    #allocation5 [shape = 's32[1]{0}', space=sflag, size = 0x4, scoped, tag = 'scoped memory for tpu_custom_call.1']
    #allocation6 [shape = 'u8[4096]{0}', space=vmem, size = 0x1000, scoped, tag = 'input window, operand 1, single buffered']
    #allocation7 [shape = 's32[1]{0}', space=sflag, size = 0x4, scoped, tag = 'scoped memory for tpu_custom_call.1']
    #allocation8 [shape = 'u8[16384]{0}', space=vmem, size = 0x4000, scoped, tag = 'input window, operand 2, single buffered']
    #allocation9 [shape = 'u8[4096]{0}', space=vmem, size = 0x1000, scoped, tag = 'output window, operand 0, single buffered']
    %13 = vsyncpa [#allocation4], 0
    %14 = vsyncpa [#allocation7], 0
    %15 = vsyncpa [#allocation5], 0
    // Predicated region
    $region2: #{tpu_custom_call.1} parent=1 // pred_check
      _
    $region3: #{tpu_custom_call.1} parent=1 // pred_check_branch
      %17 = sbr.rel (0) target = $region5
    $region4: #{tpu_custom_call.1} parent=1 // pred_region
      %s19 = ssub.s32 2048, 1280
      %20 = vsyncadd [#allocation4], %s19
      %s21 = sshll.u32 [#allocation3], 4
      %s22 = int_to_ptr.vmem [resolvable:$true] %s21
      %27 = dma.hbm_to_vmem [thread:$0]  %s0, 1280, %s22, [#allocation4], 128, 128, 8
    $region5: #{tpu_custom_call.1} parent=1 // pred_fallthru
      _
    // Predicated region
    $region6: #{tpu_custom_call.1} parent=1 // pred_check
      _
    $region7: #{tpu_custom_call.1} parent=1 // pred_check_branch
      %29 = sbr.rel (0) target = $region9
    $region8: #{tpu_custom_call.1} parent=1 // pred_region
      %s31 = ssub.s32 128, 128
      %32 = vsyncadd [#allocation7], %s31
      %s34 = sshll.u32 [#allocation6], 4
      %s35 = int_to_ptr.vmem [resolvable:$true] %s34
      %37 = dma.hbm_to_vmem [thread:$0]  %s1, 128, %s35, [#allocation7]
    $region9: #{tpu_custom_call.1} parent=1 // pred_fallthru
      _
    // Predicated region
    $region10: #{tpu_custom_call.1} parent=1 // pred_check
      _
    $region11: #{tpu_custom_call.1} parent=1 // pred_check_branch
      %39 = sbr.rel (0) target = $region13
    $region12: #{tpu_custom_call.1} parent=1 // pred_region
      %s41 = ssub.s32 512, 512
      %42 = vsyncadd [#allocation7], %s41
      %s43 = sshll.u32 [#allocation8], 4
      %s44 = int_to_ptr.vmem [resolvable:$true] %s43
      %49 = dma.hbm_to_vmem [thread:$0]  %s2, 512, %s44, [#allocation7], 128, 128, 8
    $region13: #{tpu_custom_call.1} parent=1 // pred_fallthru
      _
    // Predicated region
    $region14: #{tpu_custom_call.1} parent=1 // pred_check
      _
    $region15: #{tpu_custom_call.1} parent=1 // pred_check_branch
      %51 = sbr.rel (0) target = $region17
    $region16: #{tpu_custom_call.1} parent=1 // pred_region
      _
    $region17: #{tpu_custom_call.1} parent=1 // pred_fallthru
      _
    // Predicated region
    $region18: #{tpu_custom_call.1} parent=1 // pred_check
      _
    $region19: #{tpu_custom_call.1} parent=1 // pred_check_branch
      %53 = sbr.rel (0) target = $region21
    $region20: #{tpu_custom_call.1} parent=1 // pred_region
      _
    $region21: #{tpu_custom_call.1} parent=1 // pred_fallthru
      _
    // Predicated region
    $region22: #{tpu_custom_call.1} parent=1 // pred_check
      _
    $region23: #{tpu_custom_call.1} parent=1 // pred_check_branch
      %55 = sbr.rel (0) target = $region25
    $region24: #{tpu_custom_call.1} parent=1 // pred_region
      _
    $region25: #{tpu_custom_call.1} parent=1 // pred_fallthru
      _
    // Predicated region
    $region26: #{tpu_custom_call.1} parent=1 // pred_check
      _
    $region27: #{tpu_custom_call.1} parent=1 // pred_check_branch
      %57 = sbr.rel (0) target = $region29
    $region28: #{tpu_custom_call.1} parent=1 // pred_region
      %58 = dma.done [#allocation4], 2048
    $region29: #{tpu_custom_call.1} parent=1 // pred_fallthru
      _
    // Predicated region
    $region30: #{tpu_custom_call.1} parent=1 // pred_check
      _
    $region31: #{tpu_custom_call.1} parent=1 // pred_check_branch
      %60 = sbr.rel (0) target = $region33
    $region32: #{tpu_custom_call.1} parent=1 // pred_region
      %61 = dma.done [#allocation7], 128
    $region33: #{tpu_custom_call.1} parent=1 // pred_fallthru
      _
    // Predicated region
    $region34: #{tpu_custom_call.1} parent=1 // pred_check
      _
    $region35: #{tpu_custom_call.1} parent=1 // pred_check_branch
      %63 = sbr.rel (0) target = $region37
    $region36: #{tpu_custom_call.1} parent=1 // pred_region
      %64 = dma.done [#allocation7], 512
    $region37: #{tpu_custom_call.1} parent=1 // pred_fallthru
      _
    %v65 = vld [vmem:[#allocation3] sm:$0xff]
    %v66 = vld [vmem:[#allocation3 + $0x8] sm:$0xff]
    %v67 = vld [vmem:[#allocation3 + $0x10] sm:$0xff]
    %v68 = vld [vmem:[#allocation3 + $0x18] sm:$0xff]
    %v69 = vld [vmem:[#allocation3 + $0x20] sm:$0xff]
    %v70 = vld [vmem:[#allocation3 + $0x28] sm:$0xff]
    %v71 = vld [vmem:[#allocation3 + $0x30] sm:$0xff]
    %v72 = vld [vmem:[#allocation3 + $0x38] sm:$0xff]
    %v73 = vld [vmem:[#allocation3 + $0x40] sm:$0xff]
    %v74 = vld [vmem:[#allocation3 + $0x48] sm:$0xff]
    %v75 = vld [vmem:[#allocation3 + $0x50] sm:$0xff]
    %v76 = vld [vmem:[#allocation3 + $0x58] sm:$0xff]
    %v77 = vld [vmem:[#allocation3 + $0x60] sm:$0xff]
    %v78 = vld [vmem:[#allocation3 + $0x68] sm:$0xff]
    %v79 = vld [vmem:[#allocation3 + $0x70] sm:$0xff]
    %v80 = vld [vmem:[#allocation3 + $0x78] sm:$0xff]
    %v81 = vld [vmem:[#allocation6] sm:$0xff]
    %vm82 = vcmask 130048
    %v84 = vsel %vm82, 1.0, 0
    %86 = vmatprep.subr.mxu0 0.0
    %87 = vmatpush1.msra.mxu0 %v65
    %88 = vmatprep.subr.mxu0 0.0
    %89 = vmatpush1.msra.mxu0 %v66
    %90 = vmatprep.subr.mxu0 0.0
    %91 = vmatpush1.msra.mxu0 0.0
    %92 = vmatprep.subr.mxu0 0.0
    %93 = vmatpush1.msra.mxu0 0.0
    %94 = vmatprep.subr.mxu0 0.0
    %95 = vmatpush1.msra.mxu0 0.0
    %96 = vmatprep.subr.mxu0 0.0
    %97 = vmatpush1.msra.mxu0 0.0
    %98 = vmatprep.subr.mxu0 0.0
    %99 = vmatpush1.msra.mxu0 0.0
    %100 = vmatprep.subr.mxu0 0.0
    %101 = vmatpush1.msra.mxu0 0.0
    %102 = vmatprep.subr.mxu0 0.0
    %103 = vmatpush1.msra.mxu0 0.0
    %104 = vmatprep.subr.mxu0 0.0
    %105 = vmatpush1.msra.mxu0 0.0
    %106 = vmatprep.subr.mxu0 0.0
    %107 = vmatpush1.msra.mxu0 0.0
    %108 = vmatprep.subr.mxu0 0.0
    %109 = vmatpush1.msra.mxu0 0.0
    %110 = vmatprep.subr.mxu0 0.0
    %111 = vmatpush1.msra.mxu0 0.0
    %112 = vmatprep.subr.mxu0 0.0
    %113 = vmatpush1.msra.mxu0 0.0
    %114 = vmatprep.subr.mxu0 0.0
    %115 = vmatpush1.msra.mxu0 0.0
    %116 = vmatprep.subr.mxu0 0.0
    %117 = vmatpush1.msra.mxu0 0.0
    %118 = vmatprep.subr.mxu0 0.0
    %119 = vmatpush1.msra.mxu0 0.0
    %120 = vmatprep.subr.mxu0 0.0
    %121 = vmatpush1.msra.mxu0 0.0
    %122 = vmatprep.subr.mxu0 0.0
    %123 = vmatpush1.msra.mxu0 0.0
    %124 = vmatprep.subr.mxu0 0.0
    %125 = vmatpush1.msra.mxu0 0.0
    %126 = vmatprep.subr.mxu0 0.0
    %127 = vmatpush1.msra.mxu0 0.0
    %128 = vmatprep.subr.mxu0 0.0
    %129 = vmatpush1.msra.mxu0 0.0
    %130 = vmatprep.subr.mxu0 0.0
    %131 = vmatpush1.msra.mxu0 0.0
    %132 = vmatprep.subr.mxu0 0.0
    %133 = vmatpush1.msra.mxu0 0.0
    %134 = vmatprep.subr.mxu0 0.0
    %135 = vmatpush1.msra.mxu0 0.0
    %136 = vmatprep.subr.mxu0 0.0
    %137 = vmatpush1.msra.mxu0 0.0
    %138 = vmatprep.subr.mxu0 0.0
    %139 = vmatpush1.msra.mxu0 0.0
    %140 = vmatprep.subr.mxu0 0.0
    %141 = vmatpush1.msra.mxu0 0.0
    %142 = vmatprep.subr.mxu0 0.0
    %143 = vmatpush1.msra.mxu0 0.0
    %144 = vmatprep.subr.mxu0 0.0
    %145 = vmatpush1.msra.mxu0 0.0
    %146 = vmatprep.subr.mxu0 0.0
    %147 = vmatpush1.msra.mxu0 0.0
    %148 = vmatprep.subr.mxu0 0.0
    %149 = vmatpush1.msra.mxu0 0.0
    %150 = vmatprep.mubr.f32.mxu0 0.0
    %151 = vmatmul.mubr.f32.gmra.mrb[0].mxu0 %v84
    %v152 = vpop.f32.mrb[0].mxu0
    %v153 = vadd.f32 0.0, %v152
    %v154 = vpop.f32.mrb[0].mxu0
    %155 = vdwg.mxu0
    %156 = vmatprep.subr.mxu0 0.0
    %157 = vmatpush1.msra.mxu0 %v67
    %158 = vmatprep.subr.mxu0 0.0
    %159 = vmatpush1.msra.mxu0 %v68
    %160 = vmatprep.subr.mxu0 0.0
    %161 = vmatpush1.msra.mxu0 0.0
    %162 = vmatprep.subr.mxu0 0.0
    %163 = vmatpush1.msra.mxu0 0.0
    %164 = vmatprep.subr.mxu0 0.0
    %165 = vmatpush1.msra.mxu0 0.0
    %166 = vmatprep.subr.mxu0 0.0
    %167 = vmatpush1.msra.mxu0 0.0
    %168 = vmatprep.subr.mxu0 0.0
    %169 = vmatpush1.msra.mxu0 0.0
    %170 = vmatprep.subr.mxu0 0.0
    %171 = vmatpush1.msra.mxu0 0.0
    %172 = vmatprep.subr.mxu0 0.0
    %173 = vmatpush1.msra.mxu0 0.0
    %174 = vmatprep.subr.mxu0 0.0
    %175 = vmatpush1.msra.mxu0 0.0
    %176 = vmatprep.subr.mxu0 0.0
    %177 = vmatpush1.msra.mxu0 0.0
    %178 = vmatprep.subr.mxu0 0.0
    %179 = vmatpush1.msra.mxu0 0.0
    %180 = vmatprep.subr.mxu0 0.0
    %181 = vmatpush1.msra.mxu0 0.0
    %182 = vmatprep.subr.mxu0 0.0
    %183 = vmatpush1.msra.mxu0 0.0
    %184 = vmatprep.subr.mxu0 0.0
    %185 = vmatpush1.msra.mxu0 0.0
    %186 = vmatprep.subr.mxu0 0.0
    %187 = vmatpush1.msra.mxu0 0.0
    %188 = vmatprep.subr.mxu0 0.0
    %189 = vmatpush1.msra.mxu0 0.0
    %190 = vmatprep.subr.mxu0 0.0
    %191 = vmatpush1.msra.mxu0 0.0
    %192 = vmatprep.subr.mxu0 0.0
    %193 = vmatpush1.msra.mxu0 0.0
    %194 = vmatprep.subr.mxu0 0.0
    %195 = vmatpush1.msra.mxu0 0.0
    %196 = vmatprep.subr.mxu0 0.0
    %197 = vmatpush1.msra.mxu0 0.0
    %198 = vmatprep.subr.mxu0 0.0
    %199 = vmatpush1.msra.mxu0 0.0
    %200 = vmatprep.subr.mxu0 0.0
    %201 = vmatpush1.msra.mxu0 0.0
    %202 = vmatprep.subr.mxu0 0.0
    %203 = vmatpush1.msra.mxu0 0.0
    %204 = vmatprep.subr.mxu0 0.0
    %205 = vmatpush1.msra.mxu0 0.0
    %206 = vmatprep.subr.mxu0 0.0
    %207 = vmatpush1.msra.mxu0 0.0
    %208 = vmatprep.subr.mxu0 0.0
    %209 = vmatpush1.msra.mxu0 0.0
    %210 = vmatprep.subr.mxu0 0.0
    %211 = vmatpush1.msra.mxu0 0.0
    %212 = vmatprep.subr.mxu0 0.0
    %213 = vmatpush1.msra.mxu0 0.0
    %214 = vmatprep.subr.mxu0 0.0
    %215 = vmatpush1.msra.mxu0 0.0
    %216 = vmatprep.subr.mxu0 0.0
    %217 = vmatpush1.msra.mxu0 0.0
    %218 = vmatprep.subr.mxu0 0.0
    %219 = vmatpush1.msra.mxu0 0.0
    %220 = vmatprep.mubr.f32.mxu0 0.0
    %221 = vmatmul.mubr.f32.gmra.mrb[0].mxu0 %v84
    %v222 = vpop.f32.mrb[0].mxu0
    %v223 = vadd.f32 0.0, %v222
    %v224 = vpop.f32.mrb[0].mxu0
    %225 = vdwg.mxu0
    %226 = vmatprep.subr.mxu0 0.0
    %227 = vmatpush1.msra.mxu0 %v69
    %228 = vmatprep.subr.mxu0 0.0
    %229 = vmatpush1.msra.mxu0 %v70
    %230 = vmatprep.subr.mxu0 0.0
    %231 = vmatpush1.msra.mxu0 0.0
    %232 = vmatprep.subr.mxu0 0.0
    %233 = vmatpush1.msra.mxu0 0.0
    %234 = vmatprep.subr.mxu0 0.0
    %235 = vmatpush1.msra.mxu0 0.0
    %236 = vmatprep.subr.mxu0 0.0
    %237 = vmatpush1.msra.mxu0 0.0
    %238 = vmatprep.subr.mxu0 0.0
    %239 = vmatpush1.msra.mxu0 0.0
    %240 = vmatprep.subr.mxu0 0.0
    %241 = vmatpush1.msra.mxu0 0.0
    %242 = vmatprep.subr.mxu0 0.0
    %243 = vmatpush1.msra.mxu0 0.0
    %244 = vmatprep.subr.mxu0 0.0
    %245 = vmatpush1.msra.mxu0 0.0
    %246 = vmatprep.subr.mxu0 0.0
    %247 = vmatpush1.msra.mxu0 0.0
    %248 = vmatprep.subr.mxu0 0.0
    %249 = vmatpush1.msra.mxu0 0.0
    %250 = vmatprep.subr.mxu0 0.0
    %251 = vmatpush1.msra.mxu0 0.0
    %252 = vmatprep.subr.mxu0 0.0
    %253 = vmatpush1.msra.mxu0 0.0
    %254 = vmatprep.subr.mxu0 0.0
    %255 = vmatpush1.msra.mxu0 0.0
    %256 = vmatprep.subr.mxu0 0.0
    %257 = vmatpush1.msra.mxu0 0.0
    %258 = vmatprep.subr.mxu0 0.0
    %259 = vmatpush1.msra.mxu0 0.0
    %260 = vmatprep.subr.mxu0 0.0
    %261 = vmatpush1.msra.mxu0 0.0
    %262 = vmatprep.subr.mxu0 0.0
    %263 = vmatpush1.msra.mxu0 0.0
    %264 = vmatprep.subr.mxu0 0.0
    %265 = vmatpush1.msra.mxu0 0.0
    %266 = vmatprep.subr.mxu0 0.0
    %267 = vmatpush1.msra.mxu0 0.0
    %268 = vmatprep.subr.mxu0 0.0
    %269 = vmatpush1.msra.mxu0 0.0
    %270 = vmatprep.subr.mxu0 0.0
    %271 = vmatpush1.msra.mxu0 0.0
    %272 = vmatprep.subr.mxu0 0.0
    %273 = vmatpush1.msra.mxu0 0.0
    %274 = vmatprep.subr.mxu0 0.0
    %275 = vmatpush1.msra.mxu0 0.0
    %276 = vmatprep.subr.mxu0 0.0
    %277 = vmatpush1.msra.mxu0 0.0
    %278 = vmatprep.subr.mxu0 0.0
    %279 = vmatpush1.msra.mxu0 0.0
    %280 = vmatprep.subr.mxu0 0.0
    %281 = vmatpush1.msra.mxu0 0.0
    %282 = vmatprep.subr.mxu0 0.0
    %283 = vmatpush1.msra.mxu0 0.0
    %284 = vmatprep.subr.mxu0 0.0
    %285 = vmatpush1.msra.mxu0 0.0
    %286 = vmatprep.subr.mxu0 0.0
    %287 = vmatpush1.msra.mxu0 0.0
    %288 = vmatprep.subr.mxu0 0.0
    %289 = vmatpush1.msra.mxu0 0.0
    %290 = vmatprep.mubr.f32.mxu0 0.0
    %291 = vmatmul.mubr.f32.gmra.mrb[0].mxu0 %v84
    %v292 = vpop.f32.mrb[0].mxu0
    %v293 = vadd.f32 0.0, %v292
    %v294 = vpop.f32.mrb[0].mxu0
    %295 = vdwg.mxu0
    %296 = vmatprep.subr.mxu0 0.0
    %297 = vmatpush1.msra.mxu0 %v71
    %298 = vmatprep.subr.mxu0 0.0
    %299 = vmatpush1.msra.mxu0 %v72
    %300 = vmatprep.subr.mxu0 0.0
    %301 = vmatpush1.msra.mxu0 0.0
    %302 = vmatprep.subr.mxu0 0.0
    %303 = vmatpush1.msra.mxu0 0.0
    %304 = vmatprep.subr.mxu0 0.0
    %305 = vmatpush1.msra.mxu0 0.0
    %306 = vmatprep.subr.mxu0 0.0
    %307 = vmatpush1.msra.mxu0 0.0
    %308 = vmatprep.subr.mxu0 0.0
    %309 = vmatpush1.msra.mxu0 0.0
    %310 = vmatprep.subr.mxu0 0.0
    %311 = vmatpush1.msra.mxu0 0.0
    %312 = vmatprep.subr.mxu0 0.0
    %313 = vmatpush1.msra.mxu0 0.0
    %314 = vmatprep.subr.mxu0 0.0
    %315 = vmatpush1.msra.mxu0 0.0
    %316 = vmatprep.subr.mxu0 0.0
    %317 = vmatpush1.msra.mxu0 0.0
    %318 = vmatprep.subr.mxu0 0.0
    %319 = vmatpush1.msra.mxu0 0.0
    %320 = vmatprep.subr.mxu0 0.0
    %321 = vmatpush1.msra.mxu0 0.0
    %322 = vmatprep.subr.mxu0 0.0
    %323 = vmatpush1.msra.mxu0 0.0
    %324 = vmatprep.subr.mxu0 0.0
    %325 = vmatpush1.msra.mxu0 0.0
    %326 = vmatprep.subr.mxu0 0.0
    %327 = vmatpush1.msra.mxu0 0.0
    %328 = vmatprep.subr.mxu0 0.0
    %329 = vmatpush1.msra.mxu0 0.0
    %330 = vmatprep.subr.mxu0 0.0
    %331 = vmatpush1.msra.mxu0 0.0
    %332 = vmatprep.subr.mxu0 0.0
    %333 = vmatpush1.msra.mxu0 0.0
    %334 = vmatprep.subr.mxu0 0.0
    %335 = vmatpush1.msra.mxu0 0.0
    %336 = vmatprep.subr.mxu0 0.0
    %337 = vmatpush1.msra.mxu0 0.0
    %338 = vmatprep.subr.mxu0 0.0
    %339 = vmatpush1.msra.mxu0 0.0
    %340 = vmatprep.subr.mxu0 0.0
    %341 = vmatpush1.msra.mxu0 0.0
    %342 = vmatprep.subr.mxu0 0.0
    %343 = vmatpush1.msra.mxu0 0.0
    %344 = vmatprep.subr.mxu0 0.0
    %345 = vmatpush1.msra.mxu0 0.0
    %346 = vmatprep.subr.mxu0 0.0
    %347 = vmatpush1.msra.mxu0 0.0
    %348 = vmatprep.subr.mxu0 0.0
    %349 = vmatpush1.msra.mxu0 0.0
    %350 = vmatprep.subr.mxu0 0.0
    %351 = vmatpush1.msra.mxu0 0.0
    %352 = vmatprep.subr.mxu0 0.0
    %353 = vmatpush1.msra.mxu0 0.0
    %354 = vmatprep.subr.mxu0 0.0
    %355 = vmatpush1.msra.mxu0 0.0
    %356 = vmatprep.subr.mxu0 0.0
    %357 = vmatpush1.msra.mxu0 0.0
    %358 = vmatprep.subr.mxu0 0.0
    %359 = vmatpush1.msra.mxu0 0.0
    %360 = vmatprep.mubr.f32.mxu0 0.0
    %361 = vmatmul.mubr.f32.gmra.mrb[0].mxu0 %v84
    %v362 = vpop.f32.mrb[0].mxu0
    %v363 = vadd.f32 0.0, %v362
    %v364 = vpop.f32.mrb[0].mxu0
    %365 = vdwg.mxu0
    %366 = vmatprep.subr.mxu0 0.0
    %367 = vmatpush1.msra.mxu0 %v73
    %368 = vmatprep.subr.mxu0 0.0
    %369 = vmatpush1.msra.mxu0 %v74
    %370 = vmatprep.subr.mxu0 0.0
    %371 = vmatpush1.msra.mxu0 0.0
    %372 = vmatprep.subr.mxu0 0.0
    %373 = vmatpush1.msra.mxu0 0.0
    %374 = vmatprep.subr.mxu0 0.0
    %375 = vmatpush1.msra.mxu0 0.0
    %376 = vmatprep.subr.mxu0 0.0
    %377 = vmatpush1.msra.mxu0 0.0
    %378 = vmatprep.subr.mxu0 0.0
    %379 = vmatpush1.msra.mxu0 0.0
    %380 = vmatprep.subr.mxu0 0.0
    %381 = vmatpush1.msra.mxu0 0.0
    %382 = vmatprep.subr.mxu0 0.0
    %383 = vmatpush1.msra.mxu0 0.0
    %384 = vmatprep.subr.mxu0 0.0
    %385 = vmatpush1.msra.mxu0 0.0
    %386 = vmatprep.subr.mxu0 0.0
    %387 = vmatpush1.msra.mxu0 0.0
    %388 = vmatprep.subr.mxu0 0.0
    %389 = vmatpush1.msra.mxu0 0.0
    %390 = vmatprep.subr.mxu0 0.0
    %391 = vmatpush1.msra.mxu0 0.0
    %392 = vmatprep.subr.mxu0 0.0
    %393 = vmatpush1.msra.mxu0 0.0
    %394 = vmatprep.subr.mxu0 0.0
    %395 = vmatpush1.msra.mxu0 0.0
    %396 = vmatprep.subr.mxu0 0.0
    %397 = vmatpush1.msra.mxu0 0.0
    %398 = vmatprep.subr.mxu0 0.0
    %399 = vmatpush1.msra.mxu0 0.0
    %400 = vmatprep.subr.mxu0 0.0
    %401 = vmatpush1.msra.mxu0 0.0
    %402 = vmatprep.subr.mxu0 0.0
    %403 = vmatpush1.msra.mxu0 0.0
    %404 = vmatprep.subr.mxu0 0.0
    %405 = vmatpush1.msra.mxu0 0.0
    %406 = vmatprep.subr.mxu0 0.0
    %407 = vmatpush1.msra.mxu0 0.0
    %408 = vmatprep.subr.mxu0 0.0
    %409 = vmatpush1.msra.mxu0 0.0
    %410 = vmatprep.subr.mxu0 0.0
    %411 = vmatpush1.msra.mxu0 0.0
    %412 = vmatprep.subr.mxu0 0.0
    %413 = vmatpush1.msra.mxu0 0.0
    %414 = vmatprep.subr.mxu0 0.0
    %415 = vmatpush1.msra.mxu0 0.0
    %416 = vmatprep.subr.mxu0 0.0
    %417 = vmatpush1.msra.mxu0 0.0
    %418 = vmatprep.subr.mxu0 0.0
    %419 = vmatpush1.msra.mxu0 0.0
    %420 = vmatprep.subr.mxu0 0.0
    %421 = vmatpush1.msra.mxu0 0.0
    %422 = vmatprep.subr.mxu0 0.0
    %423 = vmatpush1.msra.mxu0 0.0
    %424 = vmatprep.subr.mxu0 0.0
    %425 = vmatpush1.msra.mxu0 0.0
    %426 = vmatprep.subr.mxu0 0.0
    %427 = vmatpush1.msra.mxu0 0.0
    %428 = vmatprep.subr.mxu0 0.0
    %429 = vmatpush1.msra.mxu0 0.0
    %430 = vmatprep.mubr.f32.mxu0 0.0
    %431 = vmatmul.mubr.f32.gmra.mrb[0].mxu0 %v84
    %v432 = vpop.f32.mrb[0].mxu0
    %v433 = vadd.f32 0.0, %v432
    %v434 = vpop.f32.mrb[0].mxu0
    %435 = vdwg.mxu0
    %436 = vmatprep.subr.mxu0 0.0
    %437 = vmatpush1.msra.mxu0 %v75
    %438 = vmatprep.subr.mxu0 0.0
    %439 = vmatpush1.msra.mxu0 %v76
    %440 = vmatprep.subr.mxu0 0.0
    %441 = vmatpush1.msra.mxu0 0.0
    %442 = vmatprep.subr.mxu0 0.0
    %443 = vmatpush1.msra.mxu0 0.0
    %444 = vmatprep.subr.mxu0 0.0
    %445 = vmatpush1.msra.mxu0 0.0
    %446 = vmatprep.subr.mxu0 0.0
    %447 = vmatpush1.msra.mxu0 0.0
    %448 = vmatprep.subr.mxu0 0.0
    %449 = vmatpush1.msra.mxu0 0.0
    %450 = vmatprep.subr.mxu0 0.0
    %451 = vmatpush1.msra.mxu0 0.0
    %452 = vmatprep.subr.mxu0 0.0
    %453 = vmatpush1.msra.mxu0 0.0
    %454 = vmatprep.subr.mxu0 0.0
    %455 = vmatpush1.msra.mxu0 0.0
    %456 = vmatprep.subr.mxu0 0.0
    %457 = vmatpush1.msra.mxu0 0.0
    %458 = vmatprep.subr.mxu0 0.0
    %459 = vmatpush1.msra.mxu0 0.0
    %460 = vmatprep.subr.mxu0 0.0
    %461 = vmatpush1.msra.mxu0 0.0
    %462 = vmatprep.subr.mxu0 0.0
    %463 = vmatpush1.msra.mxu0 0.0
    %464 = vmatprep.subr.mxu0 0.0
    %465 = vmatpush1.msra.mxu0 0.0
    %466 = vmatprep.subr.mxu0 0.0
    %467 = vmatpush1.msra.mxu0 0.0
    %468 = vmatprep.subr.mxu0 0.0
    %469 = vmatpush1.msra.mxu0 0.0
    %470 = vmatprep.subr.mxu0 0.0
    %471 = vmatpush1.msra.mxu0 0.0
    %472 = vmatprep.subr.mxu0 0.0
    %473 = vmatpush1.msra.mxu0 0.0
    %474 = vmatprep.subr.mxu0 0.0
    %475 = vmatpush1.msra.mxu0 0.0
    %476 = vmatprep.subr.mxu0 0.0
    %477 = vmatpush1.msra.mxu0 0.0
    %478 = vmatprep.subr.mxu0 0.0
    %479 = vmatpush1.msra.mxu0 0.0
    %480 = vmatprep.subr.mxu0 0.0
    %481 = vmatpush1.msra.mxu0 0.0
    %482 = vmatprep.subr.mxu0 0.0
    %483 = vmatpush1.msra.mxu0 0.0
    %484 = vmatprep.subr.mxu0 0.0
    %485 = vmatpush1.msra.mxu0 0.0
    %486 = vmatprep.subr.mxu0 0.0
    %487 = vmatpush1.msra.mxu0 0.0
    %488 = vmatprep.subr.mxu0 0.0
    %489 = vmatpush1.msra.mxu0 0.0
    %490 = vmatprep.subr.mxu0 0.0
    %491 = vmatpush1.msra.mxu0 0.0
    %492 = vmatprep.subr.mxu0 0.0
    %493 = vmatpush1.msra.mxu0 0.0
    %494 = vmatprep.subr.mxu0 0.0
    %495 = vmatpush1.msra.mxu0 0.0
    %496 = vmatprep.subr.mxu0 0.0
    %497 = vmatpush1.msra.mxu0 0.0
    %498 = vmatprep.subr.mxu0 0.0
    %499 = vmatpush1.msra.mxu0 0.0
    %500 = vmatprep.mubr.f32.mxu0 0.0
    %501 = vmatmul.mubr.f32.gmra.mrb[0].mxu0 %v84
    %v502 = vpop.f32.mrb[0].mxu0
    %v503 = vadd.f32 0.0, %v502
    %v504 = vpop.f32.mrb[0].mxu0
    %505 = vdwg.mxu0
    %506 = vmatprep.subr.mxu0 0.0
    %507 = vmatpush1.msra.mxu0 %v77
    %508 = vmatprep.subr.mxu0 0.0
    %509 = vmatpush1.msra.mxu0 %v78
    %510 = vmatprep.subr.mxu0 0.0
    %511 = vmatpush1.msra.mxu0 0.0
    %512 = vmatprep.subr.mxu0 0.0
    %513 = vmatpush1.msra.mxu0 0.0
    %514 = vmatprep.subr.mxu0 0.0
    %515 = vmatpush1.msra.mxu0 0.0
    %516 = vmatprep.subr.mxu0 0.0
    %517 = vmatpush1.msra.mxu0 0.0
    %518 = vmatprep.subr.mxu0 0.0
    %519 = vmatpush1.msra.mxu0 0.0
    %520 = vmatprep.subr.mxu0 0.0
    %521 = vmatpush1.msra.mxu0 0.0
    %522 = vmatprep.subr.mxu0 0.0
    %523 = vmatpush1.msra.mxu0 0.0
    %524 = vmatprep.subr.mxu0 0.0
    %525 = vmatpush1.msra.mxu0 0.0
    %526 = vmatprep.subr.mxu0 0.0
    %527 = vmatpush1.msra.mxu0 0.0
    %528 = vmatprep.subr.mxu0 0.0
    %529 = vmatpush1.msra.mxu0 0.0
    %530 = vmatprep.subr.mxu0 0.0
    %531 = vmatpush1.msra.mxu0 0.0
    %532 = vmatprep.subr.mxu0 0.0
    %533 = vmatpush1.msra.mxu0 0.0
    %534 = vmatprep.subr.mxu0 0.0
    %535 = vmatpush1.msra.mxu0 0.0
    %536 = vmatprep.subr.mxu0 0.0
    %537 = vmatpush1.msra.mxu0 0.0
    %538 = vmatprep.subr.mxu0 0.0
    %539 = vmatpush1.msra.mxu0 0.0
    %540 = vmatprep.subr.mxu0 0.0
    %541 = vmatpush1.msra.mxu0 0.0
    %542 = vmatprep.subr.mxu0 0.0
    %543 = vmatpush1.msra.mxu0 0.0
    %544 = vmatprep.subr.mxu0 0.0
    %545 = vmatpush1.msra.mxu0 0.0
    %546 = vmatprep.subr.mxu0 0.0
    %547 = vmatpush1.msra.mxu0 0.0
    %548 = vmatprep.subr.mxu0 0.0
    %549 = vmatpush1.msra.mxu0 0.0
    %550 = vmatprep.subr.mxu0 0.0
    %551 = vmatpush1.msra.mxu0 0.0
    %552 = vmatprep.subr.mxu0 0.0
    %553 = vmatpush1.msra.mxu0 0.0
    %554 = vmatprep.subr.mxu0 0.0
    %555 = vmatpush1.msra.mxu0 0.0
    %556 = vmatprep.subr.mxu0 0.0
    %557 = vmatpush1.msra.mxu0 0.0
    %558 = vmatprep.subr.mxu0 0.0
    %559 = vmatpush1.msra.mxu0 0.0
    %560 = vmatprep.subr.mxu0 0.0
    %561 = vmatpush1.msra.mxu0 0.0
    %562 = vmatprep.subr.mxu0 0.0
    %563 = vmatpush1.msra.mxu0 0.0
    %564 = vmatprep.subr.mxu0 0.0
    %565 = vmatpush1.msra.mxu0 0.0
    %566 = vmatprep.subr.mxu0 0.0
    %567 = vmatpush1.msra.mxu0 0.0
    %568 = vmatprep.subr.mxu0 0.0
    %569 = vmatpush1.msra.mxu0 0.0
    %570 = vmatprep.mubr.f32.mxu0 0.0
    %571 = vmatmul.mubr.f32.gmra.mrb[0].mxu0 %v84
    %v572 = vpop.f32.mrb[0].mxu0
    %v573 = vadd.f32 0.0, %v572
    %v574 = vpop.f32.mrb[0].mxu0
    %575 = vdwg.mxu0
    %576 = vmatprep.subr.mxu0 0.0
    %577 = vmatpush1.msra.mxu0 %v79
    %578 = vmatprep.subr.mxu0 0.0
    %579 = vmatpush1.msra.mxu0 %v80
    %580 = vmatprep.subr.mxu0 0.0
    %581 = vmatpush1.msra.mxu0 0.0
    %582 = vmatprep.subr.mxu0 0.0
    %583 = vmatpush1.msra.mxu0 0.0
    %584 = vmatprep.subr.mxu0 0.0
    %585 = vmatpush1.msra.mxu0 0.0
    %586 = vmatprep.subr.mxu0 0.0
    %587 = vmatpush1.msra.mxu0 0.0
    %588 = vmatprep.subr.mxu0 0.0
    %589 = vmatpush1.msra.mxu0 0.0
    %590 = vmatprep.subr.mxu0 0.0
    %591 = vmatpush1.msra.mxu0 0.0
    %592 = vmatprep.subr.mxu0 0.0
    %593 = vmatpush1.msra.mxu0 0.0
    %594 = vmatprep.subr.mxu0 0.0
    %595 = vmatpush1.msra.mxu0 0.0
    %596 = vmatprep.subr.mxu0 0.0
    %597 = vmatpush1.msra.mxu0 0.0
    %598 = vmatprep.subr.mxu0 0.0
    %599 = vmatpush1.msra.mxu0 0.0
    %600 = vmatprep.subr.mxu0 0.0
    %601 = vmatpush1.msra.mxu0 0.0
    %602 = vmatprep.subr.mxu0 0.0
    %603 = vmatpush1.msra.mxu0 0.0
    %604 = vmatprep.subr.mxu0 0.0
    %605 = vmatpush1.msra.mxu0 0.0
    %606 = vmatprep.subr.mxu0 0.0
    %607 = vmatpush1.msra.mxu0 0.0
    %608 = vmatprep.subr.mxu0 0.0
    %609 = vmatpush1.msra.mxu0 0.0
    %610 = vmatprep.subr.mxu0 0.0
    %611 = vmatpush1.msra.mxu0 0.0
    %612 = vmatprep.subr.mxu0 0.0
    %613 = vmatpush1.msra.mxu0 0.0
    %614 = vmatprep.subr.mxu0 0.0
    %615 = vmatpush1.msra.mxu0 0.0
    %616 = vmatprep.subr.mxu0 0.0
    %617 = vmatpush1.msra.mxu0 0.0
    %618 = vmatprep.subr.mxu0 0.0
    %619 = vmatpush1.msra.mxu0 0.0
    %620 = vmatprep.subr.mxu0 0.0
    %621 = vmatpush1.msra.mxu0 0.0
    %622 = vmatprep.subr.mxu0 0.0
    %623 = vmatpush1.msra.mxu0 0.0
    %624 = vmatprep.subr.mxu0 0.0
    %625 = vmatpush1.msra.mxu0 0.0
    %626 = vmatprep.subr.mxu0 0.0
    %627 = vmatpush1.msra.mxu0 0.0
    %628 = vmatprep.subr.mxu0 0.0
    %629 = vmatpush1.msra.mxu0 0.0
    %630 = vmatprep.subr.mxu0 0.0
    %631 = vmatpush1.msra.mxu0 0.0
    %632 = vmatprep.subr.mxu0 0.0
    %633 = vmatpush1.msra.mxu0 0.0
    %634 = vmatprep.subr.mxu0 0.0
    %635 = vmatpush1.msra.mxu0 0.0
    %636 = vmatprep.subr.mxu0 0.0
    %637 = vmatpush1.msra.mxu0 0.0
    %638 = vmatprep.subr.mxu0 0.0
    %639 = vmatpush1.msra.mxu0 0.0
    %640 = vmatprep.mubr.f32.mxu0 0.0
    %641 = vmatmul.mubr.f32.gmra.mrb[0].mxu0 %v84
    %v642 = vpop.f32.mrb[0].mxu0
    %v643 = vadd.f32 0.0, %v642
    %v644 = vpop.f32.mrb[0].mxu0
    %645 = vdwg.mxu0
    %v646 = vld [vmem:[#allocation8] sm:$0xff]
    %v647 = vld [vmem:[#allocation8 + $0x8] sm:$0xff]
    %v648 = vld [vmem:[#allocation8 + $0x10] sm:$0xff]
    %v649 = vld [vmem:[#allocation8 + $0x18] sm:$0xff]
    %v650 = vld [vmem:[%s3] sm:$0x1]
    %v652 = vlaneseq
    %v653 = vshrl.u32 %v652, 7
    %v654 = vsub.s32 0, %v653
    %v655 = vrot.slane %v650, %v654
    %v665 = vrot.slane %v223, 7
    %vm666 = vcmask 1041409
    %v667 = vsel %vm666, %v665, %v153
    %v668 = vrot.slane %v293, 6
    %vm669 = vcmask 1042434
    %v670 = vsel %vm669, %v668, %v667
    %v671 = vrot.slane %v363, 5
    %vm672 = vcmask 1043459
    %v673 = vsel %vm672, %v671, %v670
    %v674 = vrot.slane %v433, 4
    %vm675 = vcmask 1044484
    %v676 = vsel %vm675, %v674, %v673
    %v677 = vrot.slane %v503, 3
    %vm678 = vcmask 1045509
    %v679 = vsel %vm678, %v677, %v676
    %v680 = vrot.slane %v573, 2
    %vm681 = vcmask 1046534
    %v682 = vsel %vm681, %v680, %v679
    %v683 = vrot.slane %v643, 1
    %vm684 = vcmask 1047559
    %v685 = vsel %vm684, %v683, %v682
    %vm686 = vcmask 261120
    %v687 = vsel %vm686, %v685, 0
    %689 = vmatprep.subr.mxu0 0.0
    %690 = vmatpush1.msra.mxu0 %v646
    %691 = vmatprep.subr.mxu0 0.0
    %692 = vmatpush1.msra.mxu0 %v647
    %693 = vmatprep.subr.mxu0 0.0
    %694 = vmatpush1.msra.mxu0 %v648
    %695 = vmatprep.subr.mxu0 0.0
    %696 = vmatpush1.msra.mxu0 %v649
    %697 = vmatprep.subr.mxu0 0.0
    %698 = vmatpush1.msra.mxu0 0.0
    %699 = vmatprep.subr.mxu0 0.0
    %700 = vmatpush1.msra.mxu0 0.0
    %701 = vmatprep.subr.mxu0 0.0
    %702 = vmatpush1.msra.mxu0 0.0
    %703 = vmatprep.subr.mxu0 0.0
    %704 = vmatpush1.msra.mxu0 0.0
    %705 = vmatprep.subr.mxu0 0.0
    %706 = vmatpush1.msra.mxu0 0.0
    %707 = vmatprep.subr.mxu0 0.0
    %708 = vmatpush1.msra.mxu0 0.0
    %709 = vmatprep.subr.mxu0 0.0
    %710 = vmatpush1.msra.mxu0 0.0
    %711 = vmatprep.subr.mxu0 0.0
    %712 = vmatpush1.msra.mxu0 0.0
    %713 = vmatprep.subr.mxu0 0.0
    %714 = vmatpush1.msra.mxu0 0.0
    %715 = vmatprep.subr.mxu0 0.0
    %716 = vmatpush1.msra.mxu0 0.0
    %717 = vmatprep.subr.mxu0 0.0
    %718 = vmatpush1.msra.mxu0 0.0
    %719 = vmatprep.subr.mxu0 0.0
    %720 = vmatpush1.msra.mxu0 0.0
    %721 = vmatprep.subr.mxu0 0.0
    %722 = vmatpush1.msra.mxu0 0.0
    %723 = vmatprep.subr.mxu0 0.0
    %724 = vmatpush1.msra.mxu0 0.0
    %725 = vmatprep.subr.mxu0 0.0
    %726 = vmatpush1.msra.mxu0 0.0
    %727 = vmatprep.subr.mxu0 0.0
    %728 = vmatpush1.msra.mxu0 0.0
    %729 = vmatprep.subr.mxu0 0.0
    %730 = vmatpush1.msra.mxu0 0.0
    %731 = vmatprep.subr.mxu0 0.0
    %732 = vmatpush1.msra.mxu0 0.0
    %733 = vmatprep.subr.mxu0 0.0
    %734 = vmatpush1.msra.mxu0 0.0
    %735 = vmatprep.subr.mxu0 0.0
    %736 = vmatpush1.msra.mxu0 0.0
    %737 = vmatprep.subr.mxu0 0.0
    %738 = vmatpush1.msra.mxu0 0.0
    %739 = vmatprep.subr.mxu0 0.0
    %740 = vmatpush1.msra.mxu0 0.0
    %741 = vmatprep.subr.mxu0 0.0
    %742 = vmatpush1.msra.mxu0 0.0
    %743 = vmatprep.subr.mxu0 0.0
    %744 = vmatpush1.msra.mxu0 0.0
    %745 = vmatprep.subr.mxu0 0.0
    %746 = vmatpush1.msra.mxu0 0.0
    %747 = vmatprep.subr.mxu0 0.0
    %748 = vmatpush1.msra.mxu0 0.0
    %749 = vmatprep.subr.mxu0 0.0
    %750 = vmatpush1.msra.mxu0 0.0
    %751 = vmatprep.subr.mxu0 0.0
    %752 = vmatpush1.msra.mxu0 0.0
    %753 = vmatprep.mubr.f32.mxu0 0.0
    %754 = vmatmul.mubr.f32.gmra.mrb[0].mxu0 %v687
    %v755 = vpop.f32.mrb[0].mxu0
    %v756 = vadd.f32 %v655, %v755
    %v757 = vpop.f32.mrb[0].mxu0
    %758 = vdwg.mxu0
    %v759 = vld [vmem:[%s4] sm:$0x1]
    %v761 = vlaneseq
    %v762 = vshrl.u32 %v761, 7
    %v763 = vsub.s32 0, %v762
    %v764 = vrot.slane %v759, %v763
    %v766 = vmul.f32 %v153, %v764
    %v767 = vmul.f32 %v223, %v764
    %v768 = vmul.f32 %v293, %v764
    %v769 = vmul.f32 %v363, %v764
    %v770 = vmul.f32 %v433, %v764
    %v771 = vmul.f32 %v503, %v764
    %v772 = vmul.f32 %v573, %v764
    %v773 = vmul.f32 %v643, %v764
    %v782 = vrot.slane %v767, 7
    %v783 = vsel %vm666, %v782, %v766
    %v784 = vrot.slane %v768, 6
    %v785 = vsel %vm669, %v784, %v783
    %v786 = vrot.slane %v769, 5
    %v787 = vsel %vm672, %v786, %v785
    %v788 = vrot.slane %v770, 4
    %v789 = vsel %vm675, %v788, %v787
    %v790 = vrot.slane %v771, 3
    %v791 = vsel %vm678, %v790, %v789
    %v792 = vrot.slane %v772, 2
    %v793 = vsel %vm681, %v792, %v791
    %v794 = vrot.slane %v773, 1
    %v795 = vsel %vm684, %v794, %v793
    %v797 = vsel %vm686, %v795, 0.0
    %798 = vadd.xlane.f32.xlu0 %v797
    %v799 = vpop.xlane.xlu0 %798
    %v800 = vld [vmem:[#allocation2] sm:$0x1]
    %v802 = vlaneseq
    %v803 = vshrl.u32 %v802, 7
    %v804 = vsub.s32 0, %v803
    %v805 = vrot.slane %v800, %v804
    %v807 = vadd.f32 %v799, %v805
    %v809 = vcombine.high %v756, %v756
    %v811 = vunpack.c.l.s4 1966171168
    %v812 = vunpack.c.0.s8 %v811
    %v813 = vlaneseq
    %v814 = vshrl.u32 %v813, 7
    %v815 = vsub.s32 %v812, %v814
    %v816 = vrot.slane %v756, %v815
    %v818 = vunpack.c.l.s4 1966171168
    %v819 = vunpack.c.0.s8 %v818
    %v820 = vlaneseq
    %v821 = vshrl.u32 %v820, 7
    %v822 = vsub.s32 %v819, %v821
    %v823 = vrot.slane %v809, %v822
    %v824 = vcombine.high %v816, %v816
    %v825 = vcombine.high %v823, %v823
    %v827 = vunpack.c.l.s4 1966171168
    %v828 = vunpack.c.0.s8 %v827
    %v829 = vlaneseq
    %v830 = vshrl.u32 %v829, 7
    %v831 = vsub.s32 %v828, %v830
    %v832 = vrot.slane %v816, %v831
    %v834 = vunpack.c.l.s4 1966171168
    %v835 = vunpack.c.0.s8 %v834
    %v836 = vlaneseq
    %v837 = vshrl.u32 %v836, 7
    %v838 = vsub.s32 %v835, %v837
    %v839 = vrot.slane %v823, %v838
    %v841 = vunpack.c.l.s4 1966171168
    %v842 = vunpack.c.0.s8 %v841
    %v843 = vlaneseq
    %v844 = vshrl.u32 %v843, 7
    %v845 = vsub.s32 %v842, %v844
    %v846 = vrot.slane %v824, %v845
    %v848 = vunpack.c.l.s4 1966171168
    %v849 = vunpack.c.0.s8 %v848
    %v850 = vlaneseq
    %v851 = vshrl.u32 %v850, 7
    %v852 = vsub.s32 %v849, %v851
    %v853 = vrot.slane %v825, %v852
    %v854 = vcombine.high %v832, %v832
    %v855 = vcombine.high %v839, %v839
    %v856 = vcombine.high %v846, %v846
    %v857 = vcombine.high %v853, %v853
    %v858 = vsel %vm686, %v832, 0
    %v861 = vsel %vm686, %v65, 0
    %v864 = vsel %vm686, %v66, 0
    %866 = vmatprep.subr.mxu0 0.0
    %867 = vmatpush1.xpose.msra.mxu0 %v861
    %868 = vmatprep.subr.mxu0 0.0
    %869 = vmatpush1.xpose.msra.mxu0 %v864
    %870 = vmatprep.subr.mxu0 0.0
    %871 = vmatpush1.xpose.msra.mxu0 0.0
    %872 = vmatprep.subr.mxu0 0.0
    %873 = vmatpush1.xpose.msra.mxu0 0.0
    %874 = vmatprep.subr.mxu0 0.0
    %875 = vmatpush1.xpose.msra.mxu0 0.0
    %876 = vmatprep.subr.mxu0 0.0
    %877 = vmatpush1.xpose.msra.mxu0 0.0
    %878 = vmatprep.subr.mxu0 0.0
    %879 = vmatpush1.xpose.msra.mxu0 0.0
    %880 = vmatprep.subr.mxu0 0.0
    %881 = vmatpush1.xpose.msra.mxu0 0.0
    %882 = vmatprep.subr.mxu0 0.0
    %883 = vmatpush1.xpose.msra.mxu0 0.0
    %884 = vmatprep.subr.mxu0 0.0
    %885 = vmatpush1.xpose.msra.mxu0 0.0
    %886 = vmatprep.subr.mxu0 0.0
    %887 = vmatpush1.xpose.msra.mxu0 0.0
    %888 = vmatprep.subr.mxu0 0.0
    %889 = vmatpush1.xpose.msra.mxu0 0.0
    %890 = vmatprep.subr.mxu0 0.0
    %891 = vmatpush1.xpose.msra.mxu0 0.0
    %892 = vmatprep.subr.mxu0 0.0
    %893 = vmatpush1.xpose.msra.mxu0 0.0
    %894 = vmatprep.subr.mxu0 0.0
    %895 = vmatpush1.xpose.msra.mxu0 0.0
    %896 = vmatprep.subr.mxu0 0.0
    %897 = vmatpush1.xpose.msra.mxu0 0.0
    %898 = vmatprep.subr.mxu0 0.0
    %899 = vmatpush1.xpose.msra.mxu0 0.0
    %900 = vmatprep.subr.mxu0 0.0
    %901 = vmatpush1.xpose.msra.mxu0 0.0
    %902 = vmatprep.subr.mxu0 0.0
    %903 = vmatpush1.xpose.msra.mxu0 0.0
    %904 = vmatprep.subr.mxu0 0.0
    %905 = vmatpush1.xpose.msra.mxu0 0.0
    %906 = vmatprep.subr.mxu0 0.0
    %907 = vmatpush1.xpose.msra.mxu0 0.0
    %908 = vmatprep.subr.mxu0 0.0
    %909 = vmatpush1.xpose.msra.mxu0 0.0
    %910 = vmatprep.subr.mxu0 0.0
    %911 = vmatpush1.xpose.msra.mxu0 0.0
    %912 = vmatprep.subr.mxu0 0.0
    %913 = vmatpush1.xpose.msra.mxu0 0.0
    %914 = vmatprep.subr.mxu0 0.0
    %915 = vmatpush1.xpose.msra.mxu0 0.0
    %916 = vmatprep.subr.mxu0 0.0
    %917 = vmatpush1.xpose.msra.mxu0 0.0
    %918 = vmatprep.subr.mxu0 0.0
    %919 = vmatpush1.xpose.msra.mxu0 0.0
    %920 = vmatprep.subr.mxu0 0.0
    %921 = vmatpush1.xpose.msra.mxu0 0.0
    %922 = vmatprep.subr.mxu0 0.0
    %923 = vmatpush1.xpose.msra.mxu0 0.0
    %924 = vmatprep.subr.mxu0 0.0
    %925 = vmatpush1.xpose.msra.mxu0 0.0
    %926 = vmatprep.subr.mxu0 0.0
    %927 = vmatpush1.xpose.msra.mxu0 0.0
    %928 = vmatprep.subr.mxu0 0.0
    %929 = vmatpush1.xpose.msra.mxu0 0.0
    %930 = vmatprep.mubr.f32.mxu0 0.0
    %931 = vmatmul.mubr.f32.gmra.mrb[0].mxu0 %v858
    %v932 = vpop.f32.mrb[0].mxu0
    %v933 = vadd.f32 0.0, %v932
    %v934 = vpop.f32.mrb[0].mxu0
    %935 = vdwg.mxu0
    %v936 = vsel %vm686, %v846, 0
    %v939 = vsel %vm686, %v67, 0
    %v942 = vsel %vm686, %v68, 0
    %944 = vmatprep.subr.mxu0 0.0
    %945 = vmatpush1.xpose.msra.mxu0 %v939
    %946 = vmatprep.subr.mxu0 0.0
    %947 = vmatpush1.xpose.msra.mxu0 %v942
    %948 = vmatprep.subr.mxu0 0.0
    %949 = vmatpush1.xpose.msra.mxu0 0.0
    %950 = vmatprep.subr.mxu0 0.0
    %951 = vmatpush1.xpose.msra.mxu0 0.0
    %952 = vmatprep.subr.mxu0 0.0
    %953 = vmatpush1.xpose.msra.mxu0 0.0
    %954 = vmatprep.subr.mxu0 0.0
    %955 = vmatpush1.xpose.msra.mxu0 0.0
    %956 = vmatprep.subr.mxu0 0.0
    %957 = vmatpush1.xpose.msra.mxu0 0.0
    %958 = vmatprep.subr.mxu0 0.0
    %959 = vmatpush1.xpose.msra.mxu0 0.0
    %960 = vmatprep.subr.mxu0 0.0
    %961 = vmatpush1.xpose.msra.mxu0 0.0
    %962 = vmatprep.subr.mxu0 0.0
    %963 = vmatpush1.xpose.msra.mxu0 0.0
    %964 = vmatprep.subr.mxu0 0.0
    %965 = vmatpush1.xpose.msra.mxu0 0.0
    %966 = vmatprep.subr.mxu0 0.0
    %967 = vmatpush1.xpose.msra.mxu0 0.0
    %968 = vmatprep.subr.mxu0 0.0
    %969 = vmatpush1.xpose.msra.mxu0 0.0
    %970 = vmatprep.subr.mxu0 0.0
    %971 = vmatpush1.xpose.msra.mxu0 0.0
    %972 = vmatprep.subr.mxu0 0.0
    %973 = vmatpush1.xpose.msra.mxu0 0.0
    %974 = vmatprep.subr.mxu0 0.0
    %975 = vmatpush1.xpose.msra.mxu0 0.0
    %976 = vmatprep.subr.mxu0 0.0
    %977 = vmatpush1.xpose.msra.mxu0 0.0
    %978 = vmatprep.subr.mxu0 0.0
    %979 = vmatpush1.xpose.msra.mxu0 0.0
    %980 = vmatprep.subr.mxu0 0.0
    %981 = vmatpush1.xpose.msra.mxu0 0.0
    %982 = vmatprep.subr.mxu0 0.0
    %983 = vmatpush1.xpose.msra.mxu0 0.0
    %984 = vmatprep.subr.mxu0 0.0
    %985 = vmatpush1.xpose.msra.mxu0 0.0
    %986 = vmatprep.subr.mxu0 0.0
    %987 = vmatpush1.xpose.msra.mxu0 0.0
    %988 = vmatprep.subr.mxu0 0.0
    %989 = vmatpush1.xpose.msra.mxu0 0.0
    %990 = vmatprep.subr.mxu0 0.0
    %991 = vmatpush1.xpose.msra.mxu0 0.0
    %992 = vmatprep.subr.mxu0 0.0
    %993 = vmatpush1.xpose.msra.mxu0 0.0
    %994 = vmatprep.subr.mxu0 0.0
    %995 = vmatpush1.xpose.msra.mxu0 0.0
    %996 = vmatprep.subr.mxu0 0.0
    %997 = vmatpush1.xpose.msra.mxu0 0.0
    %998 = vmatprep.subr.mxu0 0.0
    %999 = vmatpush1.xpose.msra.mxu0 0.0
    %1000 = vmatprep.subr.mxu0 0.0
    %1001 = vmatpush1.xpose.msra.mxu0 0.0
    %1002 = vmatprep.subr.mxu0 0.0
    %1003 = vmatpush1.xpose.msra.mxu0 0.0
    %1004 = vmatprep.subr.mxu0 0.0
    %1005 = vmatpush1.xpose.msra.mxu0 0.0
    %1006 = vmatprep.subr.mxu0 0.0
    %1007 = vmatpush1.xpose.msra.mxu0 0.0
    %1008 = vmatprep.mubr.f32.mxu0 0.0
    %1009 = vmatmul.mubr.f32.gmra.mrb[0].mxu0 %v936
    %v1010 = vpop.f32.mrb[0].mxu0
    %v1011 = vadd.f32 0.0, %v1010
    %v1012 = vpop.f32.mrb[0].mxu0
    %1013 = vdwg.mxu0
    %v1014 = vsel %vm686, %v854, 0
    %v1017 = vsel %vm686, %v69, 0
    %v1020 = vsel %vm686, %v70, 0
    %1022 = vmatprep.subr.mxu0 0.0
    %1023 = vmatpush1.xpose.msra.mxu0 %v1017
    %1024 = vmatprep.subr.mxu0 0.0
    %1025 = vmatpush1.xpose.msra.mxu0 %v1020
    %1026 = vmatprep.subr.mxu0 0.0
    %1027 = vmatpush1.xpose.msra.mxu0 0.0
    %1028 = vmatprep.subr.mxu0 0.0
    %1029 = vmatpush1.xpose.msra.mxu0 0.0
    %1030 = vmatprep.subr.mxu0 0.0
    %1031 = vmatpush1.xpose.msra.mxu0 0.0
    %1032 = vmatprep.subr.mxu0 0.0
    %1033 = vmatpush1.xpose.msra.mxu0 0.0
    %1034 = vmatprep.subr.mxu0 0.0
    %1035 = vmatpush1.xpose.msra.mxu0 0.0
    %1036 = vmatprep.subr.mxu0 0.0
    %1037 = vmatpush1.xpose.msra.mxu0 0.0
    %1038 = vmatprep.subr.mxu0 0.0
    %1039 = vmatpush1.xpose.msra.mxu0 0.0
    %1040 = vmatprep.subr.mxu0 0.0
    %1041 = vmatpush1.xpose.msra.mxu0 0.0
    %1042 = vmatprep.subr.mxu0 0.0
    %1043 = vmatpush1.xpose.msra.mxu0 0.0
    %1044 = vmatprep.subr.mxu0 0.0
    %1045 = vmatpush1.xpose.msra.mxu0 0.0
    %1046 = vmatprep.subr.mxu0 0.0
    %1047 = vmatpush1.xpose.msra.mxu0 0.0
    %1048 = vmatprep.subr.mxu0 0.0
    %1049 = vmatpush1.xpose.msra.mxu0 0.0
    %1050 = vmatprep.subr.mxu0 0.0
    %1051 = vmatpush1.xpose.msra.mxu0 0.0
    %1052 = vmatprep.subr.mxu0 0.0
    %1053 = vmatpush1.xpose.msra.mxu0 0.0
    %1054 = vmatprep.subr.mxu0 0.0
    %1055 = vmatpush1.xpose.msra.mxu0 0.0
    %1056 = vmatprep.subr.mxu0 0.0
    %1057 = vmatpush1.xpose.msra.mxu0 0.0
    %1058 = vmatprep.subr.mxu0 0.0
    %1059 = vmatpush1.xpose.msra.mxu0 0.0
    %1060 = vmatprep.subr.mxu0 0.0
    %1061 = vmatpush1.xpose.msra.mxu0 0.0
    %1062 = vmatprep.subr.mxu0 0.0
    %1063 = vmatpush1.xpose.msra.mxu0 0.0
    %1064 = vmatprep.subr.mxu0 0.0
    %1065 = vmatpush1.xpose.msra.mxu0 0.0
    %1066 = vmatprep.subr.mxu0 0.0
    %1067 = vmatpush1.xpose.msra.mxu0 0.0
    %1068 = vmatprep.subr.mxu0 0.0
    %1069 = vmatpush1.xpose.msra.mxu0 0.0
    %1070 = vmatprep.subr.mxu0 0.0
    %1071 = vmatpush1.xpose.msra.mxu0 0.0
    %1072 = vmatprep.subr.mxu0 0.0
    %1073 = vmatpush1.xpose.msra.mxu0 0.0
    %1074 = vmatprep.subr.mxu0 0.0
    %1075 = vmatpush1.xpose.msra.mxu0 0.0
    %1076 = vmatprep.subr.mxu0 0.0
    %1077 = vmatpush1.xpose.msra.mxu0 0.0
    %1078 = vmatprep.subr.mxu0 0.0
    %1079 = vmatpush1.xpose.msra.mxu0 0.0
    %1080 = vmatprep.subr.mxu0 0.0
    %1081 = vmatpush1.xpose.msra.mxu0 0.0
    %1082 = vmatprep.subr.mxu0 0.0
    %1083 = vmatpush1.xpose.msra.mxu0 0.0
    %1084 = vmatprep.subr.mxu0 0.0
    %1085 = vmatpush1.xpose.msra.mxu0 0.0
    %1086 = vmatprep.mubr.f32.mxu0 0.0
    %1087 = vmatmul.mubr.f32.gmra.mrb[0].mxu0 %v1014
    %v1088 = vpop.f32.mrb[0].mxu0
    %v1089 = vadd.f32 0.0, %v1088
    %v1090 = vpop.f32.mrb[0].mxu0
    %1091 = vdwg.mxu0
    %v1092 = vsel %vm686, %v856, 0
    %v1095 = vsel %vm686, %v71, 0
    %v1098 = vsel %vm686, %v72, 0
    %1100 = vmatprep.subr.mxu0 0.0
    %1101 = vmatpush1.xpose.msra.mxu0 %v1095
    %1102 = vmatprep.subr.mxu0 0.0
    %1103 = vmatpush1.xpose.msra.mxu0 %v1098
    %1104 = vmatprep.subr.mxu0 0.0
    %1105 = vmatpush1.xpose.msra.mxu0 0.0
    %1106 = vmatprep.subr.mxu0 0.0
    %1107 = vmatpush1.xpose.msra.mxu0 0.0
    %1108 = vmatprep.subr.mxu0 0.0
    %1109 = vmatpush1.xpose.msra.mxu0 0.0
    %1110 = vmatprep.subr.mxu0 0.0
    %1111 = vmatpush1.xpose.msra.mxu0 0.0
    %1112 = vmatprep.subr.mxu0 0.0
    %1113 = vmatpush1.xpose.msra.mxu0 0.0
    %1114 = vmatprep.subr.mxu0 0.0
    %1115 = vmatpush1.xpose.msra.mxu0 0.0
    %1116 = vmatprep.subr.mxu0 0.0
    %1117 = vmatpush1.xpose.msra.mxu0 0.0
    %1118 = vmatprep.subr.mxu0 0.0
    %1119 = vmatpush1.xpose.msra.mxu0 0.0
    %1120 = vmatprep.subr.mxu0 0.0
    %1121 = vmatpush1.xpose.msra.mxu0 0.0
    %1122 = vmatprep.subr.mxu0 0.0
    %1123 = vmatpush1.xpose.msra.mxu0 0.0
    %1124 = vmatprep.subr.mxu0 0.0
    %1125 = vmatpush1.xpose.msra.mxu0 0.0
    %1126 = vmatprep.subr.mxu0 0.0
    %1127 = vmatpush1.xpose.msra.mxu0 0.0
    %1128 = vmatprep.subr.mxu0 0.0
    %1129 = vmatpush1.xpose.msra.mxu0 0.0
    %1130 = vmatprep.subr.mxu0 0.0
    %1131 = vmatpush1.xpose.msra.mxu0 0.0
    %1132 = vmatprep.subr.mxu0 0.0
    %1133 = vmatpush1.xpose.msra.mxu0 0.0
    %1134 = vmatprep.subr.mxu0 0.0
    %1135 = vmatpush1.xpose.msra.mxu0 0.0
    %1136 = vmatprep.subr.mxu0 0.0
    %1137 = vmatpush1.xpose.msra.mxu0 0.0
    %1138 = vmatprep.subr.mxu0 0.0
    %1139 = vmatpush1.xpose.msra.mxu0 0.0
    %1140 = vmatprep.subr.mxu0 0.0
    %1141 = vmatpush1.xpose.msra.mxu0 0.0
    %1142 = vmatprep.subr.mxu0 0.0
    %1143 = vmatpush1.xpose.msra.mxu0 0.0
    %1144 = vmatprep.subr.mxu0 0.0
    %1145 = vmatpush1.xpose.msra.mxu0 0.0
    %1146 = vmatprep.subr.mxu0 0.0
    %1147 = vmatpush1.xpose.msra.mxu0 0.0
    %1148 = vmatprep.subr.mxu0 0.0
    %1149 = vmatpush1.xpose.msra.mxu0 0.0
    %1150 = vmatprep.subr.mxu0 0.0
    %1151 = vmatpush1.xpose.msra.mxu0 0.0
    %1152 = vmatprep.subr.mxu0 0.0
    %1153 = vmatpush1.xpose.msra.mxu0 0.0
    %1154 = vmatprep.subr.mxu0 0.0
    %1155 = vmatpush1.xpose.msra.mxu0 0.0
    %1156 = vmatprep.subr.mxu0 0.0
    %1157 = vmatpush1.xpose.msra.mxu0 0.0
    %1158 = vmatprep.subr.mxu0 0.0
    %1159 = vmatpush1.xpose.msra.mxu0 0.0
    %1160 = vmatprep.subr.mxu0 0.0
    %1161 = vmatpush1.xpose.msra.mxu0 0.0
    %1162 = vmatprep.subr.mxu0 0.0
    %1163 = vmatpush1.xpose.msra.mxu0 0.0
    %1164 = vmatprep.mubr.f32.mxu0 0.0
    %1165 = vmatmul.mubr.f32.gmra.mrb[0].mxu0 %v1092
    %v1166 = vpop.f32.mrb[0].mxu0
    %v1167 = vadd.f32 0.0, %v1166
    %v1168 = vpop.f32.mrb[0].mxu0
    %1169 = vdwg.mxu0
    %v1170 = vsel %vm686, %v839, 0
    %v1173 = vsel %vm686, %v73, 0
    %v1176 = vsel %vm686, %v74, 0
    %1178 = vmatprep.subr.mxu0 0.0
    %1179 = vmatpush1.xpose.msra.mxu0 %v1173
    %1180 = vmatprep.subr.mxu0 0.0
    %1181 = vmatpush1.xpose.msra.mxu0 %v1176
    %1182 = vmatprep.subr.mxu0 0.0
    %1183 = vmatpush1.xpose.msra.mxu0 0.0
    %1184 = vmatprep.subr.mxu0 0.0
    %1185 = vmatpush1.xpose.msra.mxu0 0.0
    %1186 = vmatprep.subr.mxu0 0.0
    %1187 = vmatpush1.xpose.msra.mxu0 0.0
    %1188 = vmatprep.subr.mxu0 0.0
    %1189 = vmatpush1.xpose.msra.mxu0 0.0
    %1190 = vmatprep.subr.mxu0 0.0
    %1191 = vmatpush1.xpose.msra.mxu0 0.0
    %1192 = vmatprep.subr.mxu0 0.0
    %1193 = vmatpush1.xpose.msra.mxu0 0.0
    %1194 = vmatprep.subr.mxu0 0.0
    %1195 = vmatpush1.xpose.msra.mxu0 0.0
    %1196 = vmatprep.subr.mxu0 0.0
    %1197 = vmatpush1.xpose.msra.mxu0 0.0
    %1198 = vmatprep.subr.mxu0 0.0
    %1199 = vmatpush1.xpose.msra.mxu0 0.0
    %1200 = vmatprep.subr.mxu0 0.0
    %1201 = vmatpush1.xpose.msra.mxu0 0.0
    %1202 = vmatprep.subr.mxu0 0.0
    %1203 = vmatpush1.xpose.msra.mxu0 0.0
    %1204 = vmatprep.subr.mxu0 0.0
    %1205 = vmatpush1.xpose.msra.mxu0 0.0
    %1206 = vmatprep.subr.mxu0 0.0
    %1207 = vmatpush1.xpose.msra.mxu0 0.0
    %1208 = vmatprep.subr.mxu0 0.0
    %1209 = vmatpush1.xpose.msra.mxu0 0.0
    %1210 = vmatprep.subr.mxu0 0.0
    %1211 = vmatpush1.xpose.msra.mxu0 0.0
    %1212 = vmatprep.subr.mxu0 0.0
    %1213 = vmatpush1.xpose.msra.mxu0 0.0
    %1214 = vmatprep.subr.mxu0 0.0
    %1215 = vmatpush1.xpose.msra.mxu0 0.0
    %1216 = vmatprep.subr.mxu0 0.0
    %1217 = vmatpush1.xpose.msra.mxu0 0.0
    %1218 = vmatprep.subr.mxu0 0.0
    %1219 = vmatpush1.xpose.msra.mxu0 0.0
    %1220 = vmatprep.subr.mxu0 0.0
    %1221 = vmatpush1.xpose.msra.mxu0 0.0
    %1222 = vmatprep.subr.mxu0 0.0
    %1223 = vmatpush1.xpose.msra.mxu0 0.0
    %1224 = vmatprep.subr.mxu0 0.0
    %1225 = vmatpush1.xpose.msra.mxu0 0.0
    %1226 = vmatprep.subr.mxu0 0.0
    %1227 = vmatpush1.xpose.msra.mxu0 0.0
    %1228 = vmatprep.subr.mxu0 0.0
    %1229 = vmatpush1.xpose.msra.mxu0 0.0
    %1230 = vmatprep.subr.mxu0 0.0
    %1231 = vmatpush1.xpose.msra.mxu0 0.0
    %1232 = vmatprep.subr.mxu0 0.0
    %1233 = vmatpush1.xpose.msra.mxu0 0.0
    %1234 = vmatprep.subr.mxu0 0.0
    %1235 = vmatpush1.xpose.msra.mxu0 0.0
    %1236 = vmatprep.subr.mxu0 0.0
    %1237 = vmatpush1.xpose.msra.mxu0 0.0
    %1238 = vmatprep.subr.mxu0 0.0
    %1239 = vmatpush1.xpose.msra.mxu0 0.0
    %1240 = vmatprep.subr.mxu0 0.0
    %1241 = vmatpush1.xpose.msra.mxu0 0.0
    %1242 = vmatprep.mubr.f32.mxu0 0.0
    %1243 = vmatmul.mubr.f32.gmra.mrb[0].mxu0 %v1170
    %v1244 = vpop.f32.mrb[0].mxu0
    %v1245 = vadd.f32 0.0, %v1244
    %v1246 = vpop.f32.mrb[0].mxu0
    %1247 = vdwg.mxu0
    %v1248 = vsel %vm686, %v853, 0
    %v1251 = vsel %vm686, %v75, 0
    %v1254 = vsel %vm686, %v76, 0
    %1256 = vmatprep.subr.mxu0 0.0
    %1257 = vmatpush1.xpose.msra.mxu0 %v1251
    %1258 = vmatprep.subr.mxu0 0.0
    %1259 = vmatpush1.xpose.msra.mxu0 %v1254
    %1260 = vmatprep.subr.mxu0 0.0
    %1261 = vmatpush1.xpose.msra.mxu0 0.0
    %1262 = vmatprep.subr.mxu0 0.0
    %1263 = vmatpush1.xpose.msra.mxu0 0.0
    %1264 = vmatprep.subr.mxu0 0.0
    %1265 = vmatpush1.xpose.msra.mxu0 0.0
    %1266 = vmatprep.subr.mxu0 0.0
    %1267 = vmatpush1.xpose.msra.mxu0 0.0
    %1268 = vmatprep.subr.mxu0 0.0
    %1269 = vmatpush1.xpose.msra.mxu0 0.0
    %1270 = vmatprep.subr.mxu0 0.0
    %1271 = vmatpush1.xpose.msra.mxu0 0.0
    %1272 = vmatprep.subr.mxu0 0.0
    %1273 = vmatpush1.xpose.msra.mxu0 0.0
    %1274 = vmatprep.subr.mxu0 0.0
    %1275 = vmatpush1.xpose.msra.mxu0 0.0
    %1276 = vmatprep.subr.mxu0 0.0
    %1277 = vmatpush1.xpose.msra.mxu0 0.0
    %1278 = vmatprep.subr.mxu0 0.0
    %1279 = vmatpush1.xpose.msra.mxu0 0.0
    %1280 = vmatprep.subr.mxu0 0.0
    %1281 = vmatpush1.xpose.msra.mxu0 0.0
    %1282 = vmatprep.subr.mxu0 0.0
    %1283 = vmatpush1.xpose.msra.mxu0 0.0
    %1284 = vmatprep.subr.mxu0 0.0
    %1285 = vmatpush1.xpose.msra.mxu0 0.0
    %1286 = vmatprep.subr.mxu0 0.0
    %1287 = vmatpush1.xpose.msra.mxu0 0.0
    %1288 = vmatprep.subr.mxu0 0.0
    %1289 = vmatpush1.xpose.msra.mxu0 0.0
    %1290 = vmatprep.subr.mxu0 0.0
    %1291 = vmatpush1.xpose.msra.mxu0 0.0
    %1292 = vmatprep.subr.mxu0 0.0
    %1293 = vmatpush1.xpose.msra.mxu0 0.0
    %1294 = vmatprep.subr.mxu0 0.0
    %1295 = vmatpush1.xpose.msra.mxu0 0.0
    %1296 = vmatprep.subr.mxu0 0.0
    %1297 = vmatpush1.xpose.msra.mxu0 0.0
    %1298 = vmatprep.subr.mxu0 0.0
    %1299 = vmatpush1.xpose.msra.mxu0 0.0
    %1300 = vmatprep.subr.mxu0 0.0
    %1301 = vmatpush1.xpose.msra.mxu0 0.0
    %1302 = vmatprep.subr.mxu0 0.0
    %1303 = vmatpush1.xpose.msra.mxu0 0.0
    %1304 = vmatprep.subr.mxu0 0.0
    %1305 = vmatpush1.xpose.msra.mxu0 0.0
    %1306 = vmatprep.subr.mxu0 0.0
    %1307 = vmatpush1.xpose.msra.mxu0 0.0
    %1308 = vmatprep.subr.mxu0 0.0
    %1309 = vmatpush1.xpose.msra.mxu0 0.0
    %1310 = vmatprep.subr.mxu0 0.0
    %1311 = vmatpush1.xpose.msra.mxu0 0.0
    %1312 = vmatprep.subr.mxu0 0.0
    %1313 = vmatpush1.xpose.msra.mxu0 0.0
    %1314 = vmatprep.subr.mxu0 0.0
    %1315 = vmatpush1.xpose.msra.mxu0 0.0
    %1316 = vmatprep.subr.mxu0 0.0
    %1317 = vmatpush1.xpose.msra.mxu0 0.0
    %1318 = vmatprep.subr.mxu0 0.0
    %1319 = vmatpush1.xpose.msra.mxu0 0.0
    %1320 = vmatprep.mubr.f32.mxu0 0.0
    %1321 = vmatmul.mubr.f32.gmra.mrb[0].mxu0 %v1248
    %v1322 = vpop.f32.mrb[0].mxu0
    %v1323 = vadd.f32 0.0, %v1322
    %v1324 = vpop.f32.mrb[0].mxu0
    %1325 = vdwg.mxu0
    %v1326 = vsel %vm686, %v855, 0
    %v1329 = vsel %vm686, %v77, 0
    %v1332 = vsel %vm686, %v78, 0
    %1334 = vmatprep.subr.mxu0 0.0
    %1335 = vmatpush1.xpose.msra.mxu0 %v1329
    %1336 = vmatprep.subr.mxu0 0.0
    %1337 = vmatpush1.xpose.msra.mxu0 %v1332
    %1338 = vmatprep.subr.mxu0 0.0
    %1339 = vmatpush1.xpose.msra.mxu0 0.0
    %1340 = vmatprep.subr.mxu0 0.0
    %1341 = vmatpush1.xpose.msra.mxu0 0.0
    %1342 = vmatprep.subr.mxu0 0.0
    %1343 = vmatpush1.xpose.msra.mxu0 0.0
    %1344 = vmatprep.subr.mxu0 0.0
    %1345 = vmatpush1.xpose.msra.mxu0 0.0
    %1346 = vmatprep.subr.mxu0 0.0
    %1347 = vmatpush1.xpose.msra.mxu0 0.0
    %1348 = vmatprep.subr.mxu0 0.0
    %1349 = vmatpush1.xpose.msra.mxu0 0.0
    %1350 = vmatprep.subr.mxu0 0.0
    %1351 = vmatpush1.xpose.msra.mxu0 0.0
    %1352 = vmatprep.subr.mxu0 0.0
    %1353 = vmatpush1.xpose.msra.mxu0 0.0
    %1354 = vmatprep.subr.mxu0 0.0
    %1355 = vmatpush1.xpose.msra.mxu0 0.0
    %1356 = vmatprep.subr.mxu0 0.0
    %1357 = vmatpush1.xpose.msra.mxu0 0.0
    %1358 = vmatprep.subr.mxu0 0.0
    %1359 = vmatpush1.xpose.msra.mxu0 0.0
    %1360 = vmatprep.subr.mxu0 0.0
    %1361 = vmatpush1.xpose.msra.mxu0 0.0
    %1362 = vmatprep.subr.mxu0 0.0
    %1363 = vmatpush1.xpose.msra.mxu0 0.0
    %1364 = vmatprep.subr.mxu0 0.0
    %1365 = vmatpush1.xpose.msra.mxu0 0.0
    %1366 = vmatprep.subr.mxu0 0.0
    %1367 = vmatpush1.xpose.msra.mxu0 0.0
    %1368 = vmatprep.subr.mxu0 0.0
    %1369 = vmatpush1.xpose.msra.mxu0 0.0
    %1370 = vmatprep.subr.mxu0 0.0
    %1371 = vmatpush1.xpose.msra.mxu0 0.0
    %1372 = vmatprep.subr.mxu0 0.0
    %1373 = vmatpush1.xpose.msra.mxu0 0.0
    %1374 = vmatprep.subr.mxu0 0.0
    %1375 = vmatpush1.xpose.msra.mxu0 0.0
    %1376 = vmatprep.subr.mxu0 0.0
    %1377 = vmatpush1.xpose.msra.mxu0 0.0
    %1378 = vmatprep.subr.mxu0 0.0
    %1379 = vmatpush1.xpose.msra.mxu0 0.0
    %1380 = vmatprep.subr.mxu0 0.0
    %1381 = vmatpush1.xpose.msra.mxu0 0.0
    %1382 = vmatprep.subr.mxu0 0.0
    %1383 = vmatpush1.xpose.msra.mxu0 0.0
    %1384 = vmatprep.subr.mxu0 0.0
    %1385 = vmatpush1.xpose.msra.mxu0 0.0
    %1386 = vmatprep.subr.mxu0 0.0
    %1387 = vmatpush1.xpose.msra.mxu0 0.0
    %1388 = vmatprep.subr.mxu0 0.0
    %1389 = vmatpush1.xpose.msra.mxu0 0.0
    %1390 = vmatprep.subr.mxu0 0.0
    %1391 = vmatpush1.xpose.msra.mxu0 0.0
    %1392 = vmatprep.subr.mxu0 0.0
    %1393 = vmatpush1.xpose.msra.mxu0 0.0
    %1394 = vmatprep.subr.mxu0 0.0
    %1395 = vmatpush1.xpose.msra.mxu0 0.0
    %1396 = vmatprep.subr.mxu0 0.0
    %1397 = vmatpush1.xpose.msra.mxu0 0.0
    %1398 = vmatprep.mubr.f32.mxu0 0.0
    %1399 = vmatmul.mubr.f32.gmra.mrb[0].mxu0 %v1326
    %v1400 = vpop.f32.mrb[0].mxu0
    %v1401 = vadd.f32 0.0, %v1400
    %v1402 = vpop.f32.mrb[0].mxu0
    %1403 = vdwg.mxu0
    %v1404 = vsel %vm686, %v857, 0
    %v1407 = vsel %vm686, %v79, 0
    %v1410 = vsel %vm686, %v80, 0
    %1412 = vmatprep.subr.mxu0 0.0
    %1413 = vmatpush1.xpose.msra.mxu0 %v1407
    %1414 = vmatprep.subr.mxu0 0.0
    %1415 = vmatpush1.xpose.msra.mxu0 %v1410
    %1416 = vmatprep.subr.mxu0 0.0
    %1417 = vmatpush1.xpose.msra.mxu0 0.0
    %1418 = vmatprep.subr.mxu0 0.0
    %1419 = vmatpush1.xpose.msra.mxu0 0.0
    %1420 = vmatprep.subr.mxu0 0.0
    %1421 = vmatpush1.xpose.msra.mxu0 0.0
    %1422 = vmatprep.subr.mxu0 0.0
    %1423 = vmatpush1.xpose.msra.mxu0 0.0
    %1424 = vmatprep.subr.mxu0 0.0
    %1425 = vmatpush1.xpose.msra.mxu0 0.0
    %1426 = vmatprep.subr.mxu0 0.0
    %1427 = vmatpush1.xpose.msra.mxu0 0.0
    %1428 = vmatprep.subr.mxu0 0.0
    %1429 = vmatpush1.xpose.msra.mxu0 0.0
    %1430 = vmatprep.subr.mxu0 0.0
    %1431 = vmatpush1.xpose.msra.mxu0 0.0
    %1432 = vmatprep.subr.mxu0 0.0
    %1433 = vmatpush1.xpose.msra.mxu0 0.0
    %1434 = vmatprep.subr.mxu0 0.0
    %1435 = vmatpush1.xpose.msra.mxu0 0.0
    %1436 = vmatprep.subr.mxu0 0.0
    %1437 = vmatpush1.xpose.msra.mxu0 0.0
    %1438 = vmatprep.subr.mxu0 0.0
    %1439 = vmatpush1.xpose.msra.mxu0 0.0
    %1440 = vmatprep.subr.mxu0 0.0
    %1441 = vmatpush1.xpose.msra.mxu0 0.0
    %1442 = vmatprep.subr.mxu0 0.0
    %1443 = vmatpush1.xpose.msra.mxu0 0.0
    %1444 = vmatprep.subr.mxu0 0.0
    %1445 = vmatpush1.xpose.msra.mxu0 0.0
    %1446 = vmatprep.subr.mxu0 0.0
    %1447 = vmatpush1.xpose.msra.mxu0 0.0
    %1448 = vmatprep.subr.mxu0 0.0
    %1449 = vmatpush1.xpose.msra.mxu0 0.0
    %1450 = vmatprep.subr.mxu0 0.0
    %1451 = vmatpush1.xpose.msra.mxu0 0.0
    %1452 = vmatprep.subr.mxu0 0.0
    %1453 = vmatpush1.xpose.msra.mxu0 0.0
    %1454 = vmatprep.subr.mxu0 0.0
    %1455 = vmatpush1.xpose.msra.mxu0 0.0
    %1456 = vmatprep.subr.mxu0 0.0
    %1457 = vmatpush1.xpose.msra.mxu0 0.0
    %1458 = vmatprep.subr.mxu0 0.0
    %1459 = vmatpush1.xpose.msra.mxu0 0.0
    %1460 = vmatprep.subr.mxu0 0.0
    %1461 = vmatpush1.xpose.msra.mxu0 0.0
    %1462 = vmatprep.subr.mxu0 0.0
    %1463 = vmatpush1.xpose.msra.mxu0 0.0
    %1464 = vmatprep.subr.mxu0 0.0
    %1465 = vmatpush1.xpose.msra.mxu0 0.0
    %1466 = vmatprep.subr.mxu0 0.0
    %1467 = vmatpush1.xpose.msra.mxu0 0.0
    %1468 = vmatprep.subr.mxu0 0.0
    %1469 = vmatpush1.xpose.msra.mxu0 0.0
    %1470 = vmatprep.subr.mxu0 0.0
    %1471 = vmatpush1.xpose.msra.mxu0 0.0
    %1472 = vmatprep.subr.mxu0 0.0
    %1473 = vmatpush1.xpose.msra.mxu0 0.0
    %1474 = vmatprep.subr.mxu0 0.0
    %1475 = vmatpush1.xpose.msra.mxu0 0.0
    %1476 = vmatprep.mubr.f32.mxu0 0.0
    %1477 = vmatmul.mubr.f32.gmra.mrb[0].mxu0 %v1404
    %v1478 = vpop.f32.mrb[0].mxu0
    %v1479 = vadd.f32 0.0, %v1478
    %v1480 = vpop.f32.mrb[0].mxu0
    %1481 = vdwg.mxu0
    %1483 = vset.pattern.permute.xlu0 0
    %1484 = vperm.xlu0 %1483, %v807
    %v1485 = vpop.permute.xlu0 %1484
    %v1486 = vrot.slane %v1485, 1
    %v1487 = vrot.slane %v1485, 2
    %v1488 = vrot.slane %v1485, 3
    %v1489 = vrot.slane %v1485, 4
    %v1490 = vrot.slane %v1485, 5
    %v1491 = vrot.slane %v1485, 6
    %v1492 = vrot.slane %v1485, 7
    %v1501 = vadd.f32 %v933, %v1485
    %v1502 = vadd.f32 %v1011, %v1486
    %v1503 = vadd.f32 %v1089, %v1487
    %v1504 = vadd.f32 %v1167, %v1488
    %v1505 = vadd.f32 %v1245, %v1489
    %v1506 = vadd.f32 %v1323, %v1490
    %v1507 = vadd.f32 %v1401, %v1491
    %v1508 = vadd.f32 %v1479, %v1492
    %vm1509 = vcmp.eq.s32.totalorder %v81, 0
    %v1518 = vrot.slane %v1502, 7
    %v1519 = vsel %vm666, %v1518, %v1501
    %v1520 = vrot.slane %v1503, 6
    %v1521 = vsel %vm669, %v1520, %v1519
    %v1522 = vrot.slane %v1504, 5
    %v1523 = vsel %vm672, %v1522, %v1521
    %v1524 = vrot.slane %v1505, 4
    %v1525 = vsel %vm675, %v1524, %v1523
    %v1526 = vrot.slane %v1506, 3
    %v1527 = vsel %vm678, %v1526, %v1525
    %v1528 = vrot.slane %v1507, 2
    %v1529 = vsel %vm681, %v1528, %v1527
    %v1530 = vrot.slane %v1508, 1
    %v1531 = vsel %vm684, %v1530, %v1529
    %v1533 = vsel %vm1509, -1e+09, %v1531
    %v1534 = vsel %vm82, %v1533, -inf
    %1535 = vmax.xlane.f32.xlu0 %v1534
    %v1536 = vpop.xlane.xlu0 %1535
    %v1537 = vsub.f32 %v1533, %v1536
    %v1538 = vmul.f32 %v1537, 1.442695
    %v1539 = vpow.pop %v1538
    %v1540 = vsel %vm82, %v1539, 0.0
    %1541 = vadd.xlane.f32.xlu0 %v1540
    %v1542 = vpop.xlane.xlu0 %1541
    %v1543 = vrcp.pop %v1542
    %v1545 = vcombine.high %v1539, %v1539
    %v1547 = vunpack.c.l.s4 1966171168
    %v1548 = vunpack.c.0.s8 %v1547
    %v1549 = vlaneseq
    %v1550 = vshrl.u32 %v1549, 7
    %v1551 = vsub.s32 %v1548, %v1550
    %v1552 = vrot.slane %v1539, %v1551
    %v1554 = vunpack.c.l.s4 1966171168
    %v1555 = vunpack.c.0.s8 %v1554
    %v1556 = vlaneseq
    %v1557 = vshrl.u32 %v1556, 7
    %v1558 = vsub.s32 %v1555, %v1557
    %v1559 = vrot.slane %v1545, %v1558
    %v1560 = vcombine.high %v1552, %v1552
    %v1561 = vcombine.high %v1559, %v1559
    %v1563 = vunpack.c.l.s4 1966171168
    %v1564 = vunpack.c.0.s8 %v1563
    %v1565 = vlaneseq
    %v1566 = vshrl.u32 %v1565, 7
    %v1567 = vsub.s32 %v1564, %v1566
    %v1568 = vrot.slane %v1552, %v1567
    %v1570 = vunpack.c.l.s4 1966171168
    %v1571 = vunpack.c.0.s8 %v1570
    %v1572 = vlaneseq
    %v1573 = vshrl.u32 %v1572, 7
    %v1574 = vsub.s32 %v1571, %v1573
    %v1575 = vrot.slane %v1559, %v1574
    %v1577 = vunpack.c.l.s4 1966171168
    %v1578 = vunpack.c.0.s8 %v1577
    %v1579 = vlaneseq
    %v1580 = vshrl.u32 %v1579, 7
    %v1581 = vsub.s32 %v1578, %v1580
    %v1582 = vrot.slane %v1560, %v1581
    %v1584 = vunpack.c.l.s4 1966171168
    %v1585 = vunpack.c.0.s8 %v1584
    %v1586 = vlaneseq
    %v1587 = vshrl.u32 %v1586, 7
    %v1588 = vsub.s32 %v1585, %v1587
    %v1589 = vrot.slane %v1561, %v1588
    %v1590 = vcombine.high %v1568, %v1568
    %v1591 = vcombine.high %v1575, %v1575
    %v1592 = vcombine.high %v1582, %v1582
    %v1593 = vcombine.high %v1589, %v1589
    %v1594 = vsel %vm82, %v1568, 0
    %1596 = vmatprep.subr.mxu0 0.0
    %1597 = vmatpush1.msra.mxu0 %v65
    %1598 = vmatprep.subr.mxu0 0.0
    %1599 = vmatpush1.msra.mxu0 %v66
    %1600 = vmatprep.subr.mxu0 0.0
    %1601 = vmatpush1.msra.mxu0 0.0
    %1602 = vmatprep.subr.mxu0 0.0
    %1603 = vmatpush1.msra.mxu0 0.0
    %1604 = vmatprep.subr.mxu0 0.0
    %1605 = vmatpush1.msra.mxu0 0.0
    %1606 = vmatprep.subr.mxu0 0.0
    %1607 = vmatpush1.msra.mxu0 0.0
    %1608 = vmatprep.subr.mxu0 0.0
    %1609 = vmatpush1.msra.mxu0 0.0
    %1610 = vmatprep.subr.mxu0 0.0
    %1611 = vmatpush1.msra.mxu0 0.0
    %1612 = vmatprep.subr.mxu0 0.0
    %1613 = vmatpush1.msra.mxu0 0.0
    %1614 = vmatprep.subr.mxu0 0.0
    %1615 = vmatpush1.msra.mxu0 0.0
    %1616 = vmatprep.subr.mxu0 0.0
    %1617 = vmatpush1.msra.mxu0 0.0
    %1618 = vmatprep.subr.mxu0 0.0
    %1619 = vmatpush1.msra.mxu0 0.0
    %1620 = vmatprep.subr.mxu0 0.0
    %1621 = vmatpush1.msra.mxu0 0.0
    %1622 = vmatprep.subr.mxu0 0.0
    %1623 = vmatpush1.msra.mxu0 0.0
    %1624 = vmatprep.subr.mxu0 0.0
    %1625 = vmatpush1.msra.mxu0 0.0
    %1626 = vmatprep.subr.mxu0 0.0
    %1627 = vmatpush1.msra.mxu0 0.0
    %1628 = vmatprep.subr.mxu0 0.0
    %1629 = vmatpush1.msra.mxu0 0.0
    %1630 = vmatprep.subr.mxu0 0.0
    %1631 = vmatpush1.msra.mxu0 0.0
    %1632 = vmatprep.subr.mxu0 0.0
    %1633 = vmatpush1.msra.mxu0 0.0
    %1634 = vmatprep.subr.mxu0 0.0
    %1635 = vmatpush1.msra.mxu0 0.0
    %1636 = vmatprep.subr.mxu0 0.0
    %1637 = vmatpush1.msra.mxu0 0.0
    %1638 = vmatprep.subr.mxu0 0.0
    %1639 = vmatpush1.msra.mxu0 0.0
    %1640 = vmatprep.subr.mxu0 0.0
    %1641 = vmatpush1.msra.mxu0 0.0
    %1642 = vmatprep.subr.mxu0 0.0
    %1643 = vmatpush1.msra.mxu0 0.0
    %1644 = vmatprep.subr.mxu0 0.0
    %1645 = vmatpush1.msra.mxu0 0.0
    %1646 = vmatprep.subr.mxu0 0.0
    %1647 = vmatpush1.msra.mxu0 0.0
    %1648 = vmatprep.subr.mxu0 0.0
    %1649 = vmatpush1.msra.mxu0 0.0
    %1650 = vmatprep.subr.mxu0 0.0
    %1651 = vmatpush1.msra.mxu0 0.0
    %1652 = vmatprep.subr.mxu0 0.0
    %1653 = vmatpush1.msra.mxu0 0.0
    %1654 = vmatprep.subr.mxu0 0.0
    %1655 = vmatpush1.msra.mxu0 0.0
    %1656 = vmatprep.subr.mxu0 0.0
    %1657 = vmatpush1.msra.mxu0 0.0
    %1658 = vmatprep.subr.mxu0 0.0
    %1659 = vmatpush1.msra.mxu0 0.0
    %1660 = vmatprep.mubr.f32.mxu0 0.0
    %1661 = vmatmul.mubr.f32.gmra.mrb[0].mxu0 %v1594
    %v1662 = vpop.f32.mrb[0].mxu0
    %v1663 = vadd.f32 0.0, %v1662
    %v1664 = vpop.f32.mrb[0].mxu0
    %1665 = vdwg.mxu0
    %v1666 = vsel %vm82, %v1582, 0
    %1668 = vmatprep.subr.mxu0 0.0
    %1669 = vmatpush1.msra.mxu0 %v67
    %1670 = vmatprep.subr.mxu0 0.0
    %1671 = vmatpush1.msra.mxu0 %v68
    %1672 = vmatprep.subr.mxu0 0.0
    %1673 = vmatpush1.msra.mxu0 0.0
    %1674 = vmatprep.subr.mxu0 0.0
    %1675 = vmatpush1.msra.mxu0 0.0
    %1676 = vmatprep.subr.mxu0 0.0
    %1677 = vmatpush1.msra.mxu0 0.0
    %1678 = vmatprep.subr.mxu0 0.0
    %1679 = vmatpush1.msra.mxu0 0.0
    %1680 = vmatprep.subr.mxu0 0.0
    %1681 = vmatpush1.msra.mxu0 0.0
    %1682 = vmatprep.subr.mxu0 0.0
    %1683 = vmatpush1.msra.mxu0 0.0
    %1684 = vmatprep.subr.mxu0 0.0
    %1685 = vmatpush1.msra.mxu0 0.0
    %1686 = vmatprep.subr.mxu0 0.0
    %1687 = vmatpush1.msra.mxu0 0.0
    %1688 = vmatprep.subr.mxu0 0.0
    %1689 = vmatpush1.msra.mxu0 0.0
    %1690 = vmatprep.subr.mxu0 0.0
    %1691 = vmatpush1.msra.mxu0 0.0
    %1692 = vmatprep.subr.mxu0 0.0
    %1693 = vmatpush1.msra.mxu0 0.0
    %1694 = vmatprep.subr.mxu0 0.0
    %1695 = vmatpush1.msra.mxu0 0.0
    %1696 = vmatprep.subr.mxu0 0.0
    %1697 = vmatpush1.msra.mxu0 0.0
    %1698 = vmatprep.subr.mxu0 0.0
    %1699 = vmatpush1.msra.mxu0 0.0
    %1700 = vmatprep.subr.mxu0 0.0
    %1701 = vmatpush1.msra.mxu0 0.0
    %1702 = vmatprep.subr.mxu0 0.0
    %1703 = vmatpush1.msra.mxu0 0.0
    %1704 = vmatprep.subr.mxu0 0.0
    %1705 = vmatpush1.msra.mxu0 0.0
    %1706 = vmatprep.subr.mxu0 0.0
    %1707 = vmatpush1.msra.mxu0 0.0
    %1708 = vmatprep.subr.mxu0 0.0
    %1709 = vmatpush1.msra.mxu0 0.0
    %1710 = vmatprep.subr.mxu0 0.0
    %1711 = vmatpush1.msra.mxu0 0.0
    %1712 = vmatprep.subr.mxu0 0.0
    %1713 = vmatpush1.msra.mxu0 0.0
    %1714 = vmatprep.subr.mxu0 0.0
    %1715 = vmatpush1.msra.mxu0 0.0
    %1716 = vmatprep.subr.mxu0 0.0
    %1717 = vmatpush1.msra.mxu0 0.0
    %1718 = vmatprep.subr.mxu0 0.0
    %1719 = vmatpush1.msra.mxu0 0.0
    %1720 = vmatprep.subr.mxu0 0.0
    %1721 = vmatpush1.msra.mxu0 0.0
    %1722 = vmatprep.subr.mxu0 0.0
    %1723 = vmatpush1.msra.mxu0 0.0
    %1724 = vmatprep.subr.mxu0 0.0
    %1725 = vmatpush1.msra.mxu0 0.0
    %1726 = vmatprep.subr.mxu0 0.0
    %1727 = vmatpush1.msra.mxu0 0.0
    %1728 = vmatprep.subr.mxu0 0.0
    %1729 = vmatpush1.msra.mxu0 0.0
    %1730 = vmatprep.subr.mxu0 0.0
    %1731 = vmatpush1.msra.mxu0 0.0
    %1732 = vmatprep.mubr.f32.mxu0 0.0
    %1733 = vmatmul.mubr.f32.gmra.mrb[0].mxu0 %v1666
    %v1734 = vpop.f32.mrb[0].mxu0
    %v1735 = vadd.f32 0.0, %v1734
    %v1736 = vpop.f32.mrb[0].mxu0
    %1737 = vdwg.mxu0
    %v1738 = vsel %vm82, %v1590, 0
    %1740 = vmatprep.subr.mxu0 0.0
    %1741 = vmatpush1.msra.mxu0 %v69
    %1742 = vmatprep.subr.mxu0 0.0
    %1743 = vmatpush1.msra.mxu0 %v70
    %1744 = vmatprep.subr.mxu0 0.0
    %1745 = vmatpush1.msra.mxu0 0.0
    %1746 = vmatprep.subr.mxu0 0.0
    %1747 = vmatpush1.msra.mxu0 0.0
    %1748 = vmatprep.subr.mxu0 0.0
    %1749 = vmatpush1.msra.mxu0 0.0
    %1750 = vmatprep.subr.mxu0 0.0
    %1751 = vmatpush1.msra.mxu0 0.0
    %1752 = vmatprep.subr.mxu0 0.0
    %1753 = vmatpush1.msra.mxu0 0.0
    %1754 = vmatprep.subr.mxu0 0.0
    %1755 = vmatpush1.msra.mxu0 0.0
    %1756 = vmatprep.subr.mxu0 0.0
    %1757 = vmatpush1.msra.mxu0 0.0
    %1758 = vmatprep.subr.mxu0 0.0
    %1759 = vmatpush1.msra.mxu0 0.0
    %1760 = vmatprep.subr.mxu0 0.0
    %1761 = vmatpush1.msra.mxu0 0.0
    %1762 = vmatprep.subr.mxu0 0.0
    %1763 = vmatpush1.msra.mxu0 0.0
    %1764 = vmatprep.subr.mxu0 0.0
    %1765 = vmatpush1.msra.mxu0 0.0
    %1766 = vmatprep.subr.mxu0 0.0
    %1767 = vmatpush1.msra.mxu0 0.0
    %1768 = vmatprep.subr.mxu0 0.0
    %1769 = vmatpush1.msra.mxu0 0.0
    %1770 = vmatprep.subr.mxu0 0.0
    %1771 = vmatpush1.msra.mxu0 0.0
    %1772 = vmatprep.subr.mxu0 0.0
    %1773 = vmatpush1.msra.mxu0 0.0
    %1774 = vmatprep.subr.mxu0 0.0
    %1775 = vmatpush1.msra.mxu0 0.0
    %1776 = vmatprep.subr.mxu0 0.0
    %1777 = vmatpush1.msra.mxu0 0.0
    %1778 = vmatprep.subr.mxu0 0.0
    %1779 = vmatpush1.msra.mxu0 0.0
    %1780 = vmatprep.subr.mxu0 0.0
    %1781 = vmatpush1.msra.mxu0 0.0
    %1782 = vmatprep.subr.mxu0 0.0
    %1783 = vmatpush1.msra.mxu0 0.0
    %1784 = vmatprep.subr.mxu0 0.0
    %1785 = vmatpush1.msra.mxu0 0.0
    %1786 = vmatprep.subr.mxu0 0.0
    %1787 = vmatpush1.msra.mxu0 0.0
    %1788 = vmatprep.subr.mxu0 0.0
    %1789 = vmatpush1.msra.mxu0 0.0
    %1790 = vmatprep.subr.mxu0 0.0
    %1791 = vmatpush1.msra.mxu0 0.0
    %1792 = vmatprep.subr.mxu0 0.0
    %1793 = vmatpush1.msra.mxu0 0.0
    %1794 = vmatprep.subr.mxu0 0.0
    %1795 = vmatpush1.msra.mxu0 0.0
    %1796 = vmatprep.subr.mxu0 0.0
    %1797 = vmatpush1.msra.mxu0 0.0
    %1798 = vmatprep.subr.mxu0 0.0
    %1799 = vmatpush1.msra.mxu0 0.0
    %1800 = vmatprep.subr.mxu0 0.0
    %1801 = vmatpush1.msra.mxu0 0.0
    %1802 = vmatprep.subr.mxu0 0.0
    %1803 = vmatpush1.msra.mxu0 0.0
    %1804 = vmatprep.mubr.f32.mxu0 0.0
    %1805 = vmatmul.mubr.f32.gmra.mrb[0].mxu0 %v1738
    %v1806 = vpop.f32.mrb[0].mxu0
    %v1807 = vadd.f32 0.0, %v1806
    %v1808 = vpop.f32.mrb[0].mxu0
    %1809 = vdwg.mxu0
    %v1810 = vsel %vm82, %v1592, 0
    %1812 = vmatprep.subr.mxu0 0.0
    %1813 = vmatpush1.msra.mxu0 %v71
    %1814 = vmatprep.subr.mxu0 0.0
    %1815 = vmatpush1.msra.mxu0 %v72
    %1816 = vmatprep.subr.mxu0 0.0
    %1817 = vmatpush1.msra.mxu0 0.0
    %1818 = vmatprep.subr.mxu0 0.0
    %1819 = vmatpush1.msra.mxu0 0.0
    %1820 = vmatprep.subr.mxu0 0.0
    %1821 = vmatpush1.msra.mxu0 0.0
    %1822 = vmatprep.subr.mxu0 0.0
    %1823 = vmatpush1.msra.mxu0 0.0
    %1824 = vmatprep.subr.mxu0 0.0
    %1825 = vmatpush1.msra.mxu0 0.0
    %1826 = vmatprep.subr.mxu0 0.0
    %1827 = vmatpush1.msra.mxu0 0.0
    %1828 = vmatprep.subr.mxu0 0.0
    %1829 = vmatpush1.msra.mxu0 0.0
    %1830 = vmatprep.subr.mxu0 0.0
    %1831 = vmatpush1.msra.mxu0 0.0
    %1832 = vmatprep.subr.mxu0 0.0
    %1833 = vmatpush1.msra.mxu0 0.0
    %1834 = vmatprep.subr.mxu0 0.0
    %1835 = vmatpush1.msra.mxu0 0.0
    %1836 = vmatprep.subr.mxu0 0.0
    %1837 = vmatpush1.msra.mxu0 0.0
    %1838 = vmatprep.subr.mxu0 0.0
    %1839 = vmatpush1.msra.mxu0 0.0
    %1840 = vmatprep.subr.mxu0 0.0
    %1841 = vmatpush1.msra.mxu0 0.0
    %1842 = vmatprep.subr.mxu0 0.0
    %1843 = vmatpush1.msra.mxu0 0.0
    %1844 = vmatprep.subr.mxu0 0.0
    %1845 = vmatpush1.msra.mxu0 0.0
    %1846 = vmatprep.subr.mxu0 0.0
    %1847 = vmatpush1.msra.mxu0 0.0
    %1848 = vmatprep.subr.mxu0 0.0
    %1849 = vmatpush1.msra.mxu0 0.0
    %1850 = vmatprep.subr.mxu0 0.0
    %1851 = vmatpush1.msra.mxu0 0.0
    %1852 = vmatprep.subr.mxu0 0.0
    %1853 = vmatpush1.msra.mxu0 0.0
    %1854 = vmatprep.subr.mxu0 0.0
    %1855 = vmatpush1.msra.mxu0 0.0
    %1856 = vmatprep.subr.mxu0 0.0
    %1857 = vmatpush1.msra.mxu0 0.0
    %1858 = vmatprep.subr.mxu0 0.0
    %1859 = vmatpush1.msra.mxu0 0.0
    %1860 = vmatprep.subr.mxu0 0.0
    %1861 = vmatpush1.msra.mxu0 0.0
    %1862 = vmatprep.subr.mxu0 0.0
    %1863 = vmatpush1.msra.mxu0 0.0
    %1864 = vmatprep.subr.mxu0 0.0
    %1865 = vmatpush1.msra.mxu0 0.0
    %1866 = vmatprep.subr.mxu0 0.0
    %1867 = vmatpush1.msra.mxu0 0.0
    %1868 = vmatprep.subr.mxu0 0.0
    %1869 = vmatpush1.msra.mxu0 0.0
    %1870 = vmatprep.subr.mxu0 0.0
    %1871 = vmatpush1.msra.mxu0 0.0
    %1872 = vmatprep.subr.mxu0 0.0
    %1873 = vmatpush1.msra.mxu0 0.0
    %1874 = vmatprep.subr.mxu0 0.0
    %1875 = vmatpush1.msra.mxu0 0.0
    %1876 = vmatprep.mubr.f32.mxu0 0.0
    %1877 = vmatmul.mubr.f32.gmra.mrb[0].mxu0 %v1810
    %v1878 = vpop.f32.mrb[0].mxu0
    %v1879 = vadd.f32 0.0, %v1878
    %v1880 = vpop.f32.mrb[0].mxu0
    %1881 = vdwg.mxu0
    %v1882 = vsel %vm82, %v1575, 0
    %1884 = vmatprep.subr.mxu0 0.0
    %1885 = vmatpush1.msra.mxu0 %v73
    %1886 = vmatprep.subr.mxu0 0.0
    %1887 = vmatpush1.msra.mxu0 %v74
    %1888 = vmatprep.subr.mxu0 0.0
    %1889 = vmatpush1.msra.mxu0 0.0
    %1890 = vmatprep.subr.mxu0 0.0
    %1891 = vmatpush1.msra.mxu0 0.0
    %1892 = vmatprep.subr.mxu0 0.0
    %1893 = vmatpush1.msra.mxu0 0.0
    %1894 = vmatprep.subr.mxu0 0.0
    %1895 = vmatpush1.msra.mxu0 0.0
    %1896 = vmatprep.subr.mxu0 0.0
    %1897 = vmatpush1.msra.mxu0 0.0
    %1898 = vmatprep.subr.mxu0 0.0
    %1899 = vmatpush1.msra.mxu0 0.0
    %1900 = vmatprep.subr.mxu0 0.0
    %1901 = vmatpush1.msra.mxu0 0.0
    %1902 = vmatprep.subr.mxu0 0.0
    %1903 = vmatpush1.msra.mxu0 0.0
    %1904 = vmatprep.subr.mxu0 0.0
    %1905 = vmatpush1.msra.mxu0 0.0
    %1906 = vmatprep.subr.mxu0 0.0
    %1907 = vmatpush1.msra.mxu0 0.0
    %1908 = vmatprep.subr.mxu0 0.0
    %1909 = vmatpush1.msra.mxu0 0.0
    %1910 = vmatprep.subr.mxu0 0.0
    %1911 = vmatpush1.msra.mxu0 0.0
    %1912 = vmatprep.subr.mxu0 0.0
    %1913 = vmatpush1.msra.mxu0 0.0
    %1914 = vmatprep.subr.mxu0 0.0
    %1915 = vmatpush1.msra.mxu0 0.0
    %1916 = vmatprep.subr.mxu0 0.0
    %1917 = vmatpush1.msra.mxu0 0.0
    %1918 = vmatprep.subr.mxu0 0.0
    %1919 = vmatpush1.msra.mxu0 0.0
    %1920 = vmatprep.subr.mxu0 0.0
    %1921 = vmatpush1.msra.mxu0 0.0
    %1922 = vmatprep.subr.mxu0 0.0
    %1923 = vmatpush1.msra.mxu0 0.0
    %1924 = vmatprep.subr.mxu0 0.0
    %1925 = vmatpush1.msra.mxu0 0.0
    %1926 = vmatprep.subr.mxu0 0.0
    %1927 = vmatpush1.msra.mxu0 0.0
    %1928 = vmatprep.subr.mxu0 0.0
    %1929 = vmatpush1.msra.mxu0 0.0
    %1930 = vmatprep.subr.mxu0 0.0
    %1931 = vmatpush1.msra.mxu0 0.0
    %1932 = vmatprep.subr.mxu0 0.0
    %1933 = vmatpush1.msra.mxu0 0.0
    %1934 = vmatprep.subr.mxu0 0.0
    %1935 = vmatpush1.msra.mxu0 0.0
    %1936 = vmatprep.subr.mxu0 0.0
    %1937 = vmatpush1.msra.mxu0 0.0
    %1938 = vmatprep.subr.mxu0 0.0
    %1939 = vmatpush1.msra.mxu0 0.0
    %1940 = vmatprep.subr.mxu0 0.0
    %1941 = vmatpush1.msra.mxu0 0.0
    %1942 = vmatprep.subr.mxu0 0.0
    %1943 = vmatpush1.msra.mxu0 0.0
    %1944 = vmatprep.subr.mxu0 0.0
    %1945 = vmatpush1.msra.mxu0 0.0
    %1946 = vmatprep.subr.mxu0 0.0
    %1947 = vmatpush1.msra.mxu0 0.0
    %1948 = vmatprep.mubr.f32.mxu0 0.0
    %1949 = vmatmul.mubr.f32.gmra.mrb[0].mxu0 %v1882
    %v1950 = vpop.f32.mrb[0].mxu0
    %v1951 = vadd.f32 0.0, %v1950
    %v1952 = vpop.f32.mrb[0].mxu0
    %1953 = vdwg.mxu0
    %v1954 = vsel %vm82, %v1589, 0
    %1956 = vmatprep.subr.mxu0 0.0
    %1957 = vmatpush1.msra.mxu0 %v75
    %1958 = vmatprep.subr.mxu0 0.0
    %1959 = vmatpush1.msra.mxu0 %v76
    %1960 = vmatprep.subr.mxu0 0.0
    %1961 = vmatpush1.msra.mxu0 0.0
    %1962 = vmatprep.subr.mxu0 0.0
    %1963 = vmatpush1.msra.mxu0 0.0
    %1964 = vmatprep.subr.mxu0 0.0
    %1965 = vmatpush1.msra.mxu0 0.0
    %1966 = vmatprep.subr.mxu0 0.0
    %1967 = vmatpush1.msra.mxu0 0.0
    %1968 = vmatprep.subr.mxu0 0.0
    %1969 = vmatpush1.msra.mxu0 0.0
    %1970 = vmatprep.subr.mxu0 0.0
    %1971 = vmatpush1.msra.mxu0 0.0
    %1972 = vmatprep.subr.mxu0 0.0
    %1973 = vmatpush1.msra.mxu0 0.0
    %1974 = vmatprep.subr.mxu0 0.0
    %1975 = vmatpush1.msra.mxu0 0.0
    %1976 = vmatprep.subr.mxu0 0.0
    %1977 = vmatpush1.msra.mxu0 0.0
    %1978 = vmatprep.subr.mxu0 0.0
    %1979 = vmatpush1.msra.mxu0 0.0
    %1980 = vmatprep.subr.mxu0 0.0
    %1981 = vmatpush1.msra.mxu0 0.0
    %1982 = vmatprep.subr.mxu0 0.0
    %1983 = vmatpush1.msra.mxu0 0.0
    %1984 = vmatprep.subr.mxu0 0.0
    %1985 = vmatpush1.msra.mxu0 0.0
    %1986 = vmatprep.subr.mxu0 0.0
    %1987 = vmatpush1.msra.mxu0 0.0
    %1988 = vmatprep.subr.mxu0 0.0
    %1989 = vmatpush1.msra.mxu0 0.0
    %1990 = vmatprep.subr.mxu0 0.0
    %1991 = vmatpush1.msra.mxu0 0.0
    %1992 = vmatprep.subr.mxu0 0.0
    %1993 = vmatpush1.msra.mxu0 0.0
    %1994 = vmatprep.subr.mxu0 0.0
    %1995 = vmatpush1.msra.mxu0 0.0
    %1996 = vmatprep.subr.mxu0 0.0
    %1997 = vmatpush1.msra.mxu0 0.0
    %1998 = vmatprep.subr.mxu0 0.0
    %1999 = vmatpush1.msra.mxu0 0.0
    %2000 = vmatprep.subr.mxu0 0.0
    %2001 = vmatpush1.msra.mxu0 0.0
    %2002 = vmatprep.subr.mxu0 0.0
    %2003 = vmatpush1.msra.mxu0 0.0
    %2004 = vmatprep.subr.mxu0 0.0
    %2005 = vmatpush1.msra.mxu0 0.0
    %2006 = vmatprep.subr.mxu0 0.0
    %2007 = vmatpush1.msra.mxu0 0.0
    %2008 = vmatprep.subr.mxu0 0.0
    %2009 = vmatpush1.msra.mxu0 0.0
    %2010 = vmatprep.subr.mxu0 0.0
    %2011 = vmatpush1.msra.mxu0 0.0
    %2012 = vmatprep.subr.mxu0 0.0
    %2013 = vmatpush1.msra.mxu0 0.0
    %2014 = vmatprep.subr.mxu0 0.0
    %2015 = vmatpush1.msra.mxu0 0.0
    %2016 = vmatprep.subr.mxu0 0.0
    %2017 = vmatpush1.msra.mxu0 0.0
    %2018 = vmatprep.subr.mxu0 0.0
    %2019 = vmatpush1.msra.mxu0 0.0
    %2020 = vmatprep.mubr.f32.mxu0 0.0
    %2021 = vmatmul.mubr.f32.gmra.mrb[0].mxu0 %v1954
    %v2022 = vpop.f32.mrb[0].mxu0
    %v2023 = vadd.f32 0.0, %v2022
    %v2024 = vpop.f32.mrb[0].mxu0
    %2025 = vdwg.mxu0
    %v2026 = vsel %vm82, %v1591, 0
    %2028 = vmatprep.subr.mxu0 0.0
    %2029 = vmatpush1.msra.mxu0 %v77
    %2030 = vmatprep.subr.mxu0 0.0
    %2031 = vmatpush1.msra.mxu0 %v78
    %2032 = vmatprep.subr.mxu0 0.0
    %2033 = vmatpush1.msra.mxu0 0.0
    %2034 = vmatprep.subr.mxu0 0.0
    %2035 = vmatpush1.msra.mxu0 0.0
    %2036 = vmatprep.subr.mxu0 0.0
    %2037 = vmatpush1.msra.mxu0 0.0
    %2038 = vmatprep.subr.mxu0 0.0
    %2039 = vmatpush1.msra.mxu0 0.0
    %2040 = vmatprep.subr.mxu0 0.0
    %2041 = vmatpush1.msra.mxu0 0.0
    %2042 = vmatprep.subr.mxu0 0.0
    %2043 = vmatpush1.msra.mxu0 0.0
    %2044 = vmatprep.subr.mxu0 0.0
    %2045 = vmatpush1.msra.mxu0 0.0
    %2046 = vmatprep.subr.mxu0 0.0
    %2047 = vmatpush1.msra.mxu0 0.0
    %2048 = vmatprep.subr.mxu0 0.0
    %2049 = vmatpush1.msra.mxu0 0.0
    %2050 = vmatprep.subr.mxu0 0.0
    %2051 = vmatpush1.msra.mxu0 0.0
    %2052 = vmatprep.subr.mxu0 0.0
    %2053 = vmatpush1.msra.mxu0 0.0
    %2054 = vmatprep.subr.mxu0 0.0
    %2055 = vmatpush1.msra.mxu0 0.0
    %2056 = vmatprep.subr.mxu0 0.0
    %2057 = vmatpush1.msra.mxu0 0.0
    %2058 = vmatprep.subr.mxu0 0.0
    %2059 = vmatpush1.msra.mxu0 0.0
    %2060 = vmatprep.subr.mxu0 0.0
    %2061 = vmatpush1.msra.mxu0 0.0
    %2062 = vmatprep.subr.mxu0 0.0
    %2063 = vmatpush1.msra.mxu0 0.0
    %2064 = vmatprep.subr.mxu0 0.0
    %2065 = vmatpush1.msra.mxu0 0.0
    %2066 = vmatprep.subr.mxu0 0.0
    %2067 = vmatpush1.msra.mxu0 0.0
    %2068 = vmatprep.subr.mxu0 0.0
    %2069 = vmatpush1.msra.mxu0 0.0
    %2070 = vmatprep.subr.mxu0 0.0
    %2071 = vmatpush1.msra.mxu0 0.0
    %2072 = vmatprep.subr.mxu0 0.0
    %2073 = vmatpush1.msra.mxu0 0.0
    %2074 = vmatprep.subr.mxu0 0.0
    %2075 = vmatpush1.msra.mxu0 0.0
    %2076 = vmatprep.subr.mxu0 0.0
    %2077 = vmatpush1.msra.mxu0 0.0
    %2078 = vmatprep.subr.mxu0 0.0
    %2079 = vmatpush1.msra.mxu0 0.0
    %2080 = vmatprep.subr.mxu0 0.0
    %2081 = vmatpush1.msra.mxu0 0.0
    %2082 = vmatprep.subr.mxu0 0.0
    %2083 = vmatpush1.msra.mxu0 0.0
    %2084 = vmatprep.subr.mxu0 0.0
    %2085 = vmatpush1.msra.mxu0 0.0
    %2086 = vmatprep.subr.mxu0 0.0
    %2087 = vmatpush1.msra.mxu0 0.0
    %2088 = vmatprep.subr.mxu0 0.0
    %2089 = vmatpush1.msra.mxu0 0.0
    %2090 = vmatprep.subr.mxu0 0.0
    %2091 = vmatpush1.msra.mxu0 0.0
    %2092 = vmatprep.mubr.f32.mxu0 0.0
    %2093 = vmatmul.mubr.f32.gmra.mrb[0].mxu0 %v2026
    %v2094 = vpop.f32.mrb[0].mxu0
    %v2095 = vadd.f32 0.0, %v2094
    %v2096 = vpop.f32.mrb[0].mxu0
    %2097 = vdwg.mxu0
    %v2098 = vsel %vm82, %v1593, 0
    %2100 = vmatprep.subr.mxu0 0.0
    %2101 = vmatpush1.msra.mxu0 %v79
    %2102 = vmatprep.subr.mxu0 0.0
    %2103 = vmatpush1.msra.mxu0 %v80
    %2104 = vmatprep.subr.mxu0 0.0
    %2105 = vmatpush1.msra.mxu0 0.0
    %2106 = vmatprep.subr.mxu0 0.0
    %2107 = vmatpush1.msra.mxu0 0.0
    %2108 = vmatprep.subr.mxu0 0.0
    %2109 = vmatpush1.msra.mxu0 0.0
    %2110 = vmatprep.subr.mxu0 0.0
    %2111 = vmatpush1.msra.mxu0 0.0
    %2112 = vmatprep.subr.mxu0 0.0
    %2113 = vmatpush1.msra.mxu0 0.0
    %2114 = vmatprep.subr.mxu0 0.0
    %2115 = vmatpush1.msra.mxu0 0.0
    %2116 = vmatprep.subr.mxu0 0.0
    %2117 = vmatpush1.msra.mxu0 0.0
    %2118 = vmatprep.subr.mxu0 0.0
    %2119 = vmatpush1.msra.mxu0 0.0
    %2120 = vmatprep.subr.mxu0 0.0
    %2121 = vmatpush1.msra.mxu0 0.0
    %2122 = vmatprep.subr.mxu0 0.0
    %2123 = vmatpush1.msra.mxu0 0.0
    %2124 = vmatprep.subr.mxu0 0.0
    %2125 = vmatpush1.msra.mxu0 0.0
    %2126 = vmatprep.subr.mxu0 0.0
    %2127 = vmatpush1.msra.mxu0 0.0
    %2128 = vmatprep.subr.mxu0 0.0
    %2129 = vmatpush1.msra.mxu0 0.0
    %2130 = vmatprep.subr.mxu0 0.0
    %2131 = vmatpush1.msra.mxu0 0.0
    %2132 = vmatprep.subr.mxu0 0.0
    %2133 = vmatpush1.msra.mxu0 0.0
    %2134 = vmatprep.subr.mxu0 0.0
    %2135 = vmatpush1.msra.mxu0 0.0
    %2136 = vmatprep.subr.mxu0 0.0
    %2137 = vmatpush1.msra.mxu0 0.0
    %2138 = vmatprep.subr.mxu0 0.0
    %2139 = vmatpush1.msra.mxu0 0.0
    %2140 = vmatprep.subr.mxu0 0.0
    %2141 = vmatpush1.msra.mxu0 0.0
    %2142 = vmatprep.subr.mxu0 0.0
    %2143 = vmatpush1.msra.mxu0 0.0
    %2144 = vmatprep.subr.mxu0 0.0
    %2145 = vmatpush1.msra.mxu0 0.0
    %2146 = vmatprep.subr.mxu0 0.0
    %2147 = vmatpush1.msra.mxu0 0.0
    %2148 = vmatprep.subr.mxu0 0.0
    %2149 = vmatpush1.msra.mxu0 0.0
    %2150 = vmatprep.subr.mxu0 0.0
    %2151 = vmatpush1.msra.mxu0 0.0
    %2152 = vmatprep.subr.mxu0 0.0
    %2153 = vmatpush1.msra.mxu0 0.0
    %2154 = vmatprep.subr.mxu0 0.0
    %2155 = vmatpush1.msra.mxu0 0.0
    %2156 = vmatprep.subr.mxu0 0.0
    %2157 = vmatpush1.msra.mxu0 0.0
    %2158 = vmatprep.subr.mxu0 0.0
    %2159 = vmatpush1.msra.mxu0 0.0
    %2160 = vmatprep.subr.mxu0 0.0
    %2161 = vmatpush1.msra.mxu0 0.0
    %2162 = vmatprep.subr.mxu0 0.0
    %2163 = vmatpush1.msra.mxu0 0.0
    %2164 = vmatprep.mubr.f32.mxu0 0.0
    %2165 = vmatmul.mubr.f32.gmra.mrb[0].mxu0 %v2098
    %v2166 = vpop.f32.mrb[0].mxu0
    %v2167 = vadd.f32 0.0, %v2166
    %v2168 = vpop.f32.mrb[0].mxu0
    %2169 = vdwg.mxu0
    %v2171 = vrot.slane %v1543, 1
    %v2172 = vrot.slane %v1543, 2
    %v2173 = vrot.slane %v1543, 3
    %v2174 = vrot.slane %v1543, 4
    %v2175 = vrot.slane %v1543, 5
    %v2176 = vrot.slane %v1543, 6
    %v2177 = vrot.slane %v1543, 7
    %v2186 = vmul.f32 %v1663, %v1543
    %v2187 = vmul.f32 %v1735, %v2171
    %v2188 = vmul.f32 %v1807, %v2172
    %v2189 = vmul.f32 %v1879, %v2173
    %v2190 = vmul.f32 %v1951, %v2174
    %v2191 = vmul.f32 %v2023, %v2175
    %v2192 = vmul.f32 %v2095, %v2176
    %v2193 = vmul.f32 %v2167, %v2177
    %v2202 = vrot.slane %v2187, 7
    %v2203 = vsel %vm666, %v2202, %v2186
    %v2204 = vrot.slane %v2188, 6
    %v2205 = vsel %vm669, %v2204, %v2203
    %v2206 = vrot.slane %v2189, 5
    %v2207 = vsel %vm672, %v2206, %v2205
    %v2208 = vrot.slane %v2190, 4
    %v2209 = vsel %vm675, %v2208, %v2207
    %v2210 = vrot.slane %v2191, 3
    %v2211 = vsel %vm678, %v2210, %v2209
    %v2212 = vrot.slane %v2192, 2
    %v2213 = vsel %vm681, %v2212, %v2211
    %v2214 = vrot.slane %v2193, 1
    %v2215 = vsel %vm684, %v2214, %v2213
    %2217 = vst.msk [vmem:[#allocation9] sm:$0xff] %vm686, %v2215
    // Predicated region
    $region38: #{tpu_custom_call.1} parent=1 // pred_check
      _
    $region39: #{tpu_custom_call.1} parent=1 // pred_check_branch
      %2219 = sbr.rel (0) target = $region41
    $region40: #{tpu_custom_call.1} parent=1 // pred_region
      %s2221 = ssub.s32 128, 128
      %2222 = vsyncadd [#allocation5], %s2221
      %s2224 = sshll.u32 [#allocation9], 4
      %s2225 = int_to_ptr.vmem [resolvable:$true] %s2224
      %2227 = dma.vmem_to_hbm [thread:$0]  %s2225, 128, %s6, [#allocation5]
    $region41: #{tpu_custom_call.1} parent=1 // pred_fallthru
      _
    // Predicated region
    $region42: #{tpu_custom_call.1} parent=1 // pred_check
      _
    $region43: #{tpu_custom_call.1} parent=1 // pred_check_branch
      %2229 = sbr.rel (0) target = $region45
    $region44: #{tpu_custom_call.1} parent=1 // pred_region
      %2230 = dma.done [#allocation5], 128
    $region45: #{tpu_custom_call.1} parent=1 // pred_fallthru
      _
    %2231 = vsyncpa [#allocation4], 1
    %2232 = vsyncpa [#allocation7], 1
    %2233 = vsyncpa [#allocation5], 1

</llo_original>
